<compile_context>
chip_gen: v7x
topology: tpu7x:2x2x1
jax: 0.10.0
libtpu: 0.0.40
codegen_flags: <defaults>
</compile_context>

<pallas_src>
import math

import jax
import jax.numpy as jnp
from jax import lax
from jax.experimental import pallas as pl
from jax.experimental.pallas import tpu as pltpu


def _round_up(x: int, m: int) -> int:
    return ((x + m - 1) // m) * m


def make_gaussian_1d(sigma: float, kernel_size: int) -> jnp.ndarray:
    """Normalized 1-D Gaussian, same construction as the PyTorch __init__."""
    mu = kernel_size // 2
    vals = [math.exp(-(x - mu) ** 2 / float(2 * sigma ** 2)) for x in range(kernel_size)]
    g = jnp.asarray(vals, dtype=jnp.float32)
    return g / jnp.sum(g)


def _make_sep_gauss_kernel(K, S, TR, R, O_rows, W_out_tot):
    """Separable Gaussian conv for one (channel, sigma) output plane.

    w_ref    : SMEM (S*K,)             all per-sigma 1-D windows (scalar reads)
    x_ref    : VMEM (R, W_in_tot)      channel plane, zero-padded rows+cols in wrapper
    o_ref    : VMEM (O_rows, W_out_tot) lane/sublane-dense output (cropped in wrapper)
    hbuf_ref : VMEM (R, W_out_tot)     horizontal-pass result (no memset needed:
                                       halo rows are produced from zero input rows)
    """
    n_hstrips = R // TR
    n_vstrips = O_rows // TR

    def kernel(w_ref, x_ref, o_ref, hbuf_ref):
        s = pl.program_id(1)                 # sigma index (inner grid axis)
        base = s * K
        # K scalar SMEM reads, shared by both passes.
        g = [w_ref[base + k] for k in range(K)]

        # ---- horizontal pass: K lane-shifted taps per 8-row strip, acc in regs ----
        def hstrip(i, carry):
            r0 = pl.multiple_of(i * TR, TR)
            rows = pl.ds(r0, TR)
            acc = g[0] * x_ref[rows, pl.ds(0, W_out_tot)]
            for k in range(1, K):
                acc = acc + g[k] * x_ref[rows, pl.ds(k, W_out_tot)]
            hbuf_ref[rows, :] = acc          # single sublane-aligned store per strip
            return carry

        lax.fori_loop(0, n_hstrips, hstrip, 0, unroll=(n_hstrips <= 8))

        # ---- vertical pass: K sublane-shifted taps per 8-row strip, acc in regs ----
        def vstrip(j, carry):
            r0 = pl.multiple_of(j * TR, TR)
            acc = g[0] * hbuf_ref[pl.ds(r0, TR), :]
            for k in range(1, K):
                acc = acc + g[k] * hbuf_ref[pl.ds(r0 + k, TR), :]
            o_ref[pl.ds(r0, TR), :] = acc.astype(o_ref.dtype)
            return carry

        lax.fori_loop(0, n_vstrips, vstrip, 0, unroll=(n_vstrips <= 8))

    return kernel


def gaussian_forward(dotmaps: jnp.ndarray, sigmalist, kernel_size: int,
                     stride: int = 1, padding: int = 0) -> jnp.ndarray:
    """dotmaps: (C, H, W) -> (1, C*len(sigmalist), H_out, W_out), PyTorch-identical."""
    C, H, W = dotmaps.shape
    S = len(sigmalist)
    K = kernel_size
    P = padding
    H_out = H + 2 * P - K + 1
    W_out = W + 2 * P - K + 1
    assert H_out > 0 and W_out > 0, "invalid kernel_size/padding for this input"

    TR = 8                                   # sublane-aligned row strips

    # Lane-dense output and input widths; sublane-dense row counts.
    W_out_tot = _round_up(W_out, 128)
    W_in_tot = _round_up(W_out_tot + K - 1, 128)
    O_rows = _round_up(H_out, TR)
    R = _round_up(O_rows + K - 1, TR)        # padded-input / scratch row count (>= H+2P)

    # (S, K) normalized 1-D Gaussians, flattened for SMEM.
    g1d = jnp.stack([make_gaussian_1d(float(sg), K) for sg in sigmalist])
    w_flat = g1d.reshape(-1).astype(jnp.float32)

    # Single combined pad: conv zero-pad (rows and cols) + lane/sublane density pad.
    x = dotmaps.astype(jnp.float32)
    xpad = jnp.pad(x, ((0, 0), (P, R - P - H), (P, W_in_tot - P - W)))  # (C, R, W_in_tot)

    kernel = _make_sep_gauss_kernel(K, S, TR, R, O_rows, W_out_tot)

    # VMEM budget: double-buffered in/out blocks + the horizontal-pass scratch.
    MiB = 1024 * 1024
    blk_in = R * W_in_tot * 4
    blk_out = O_rows * W_out_tot * 4
    hbuf_b = R * W_out_tot * 4
    needed = 2 * blk_in + 2 * blk_out + hbuf_b
    cap = 96 * MiB
    try:
        phys = getattr(pltpu.get_tpu_info(), "vmem_capacity_bytes", None)
        if phys:
            cap = max(32 * MiB, min(cap, int(phys) - 16 * MiB))
    except Exception:
        pass
    vmem_limit = int(min(max(needed + 4 * MiB, 16 * MiB), cap))
    vmem_limit = int(max(vmem_limit, needed + 2 * MiB))   # never below the footprint

    out = pl.pallas_call(
        kernel,
        out_shape=jax.ShapeDtypeStruct((C, S, O_rows, W_out_tot), jnp.float32),
        grid=(C, S),                                   # s innermost: channel reused S times
        in_specs=[
            pl.BlockSpec(memory_space=pltpu.MemorySpace.SMEM),              # weights
            pl.BlockSpec((None, R, W_in_tot), lambda c, s: (c, 0, 0)),      # plane dep. on c only
        ],
        out_specs=pl.BlockSpec((None, None, O_rows, W_out_tot),
                               lambda c, s: (c, s, 0, 0)),
        scratch_shapes=[pltpu.VMEM((R, W_out_tot), jnp.float32)],
        compiler_params=pltpu.CompilerParams(
            dimension_semantics=("parallel", "arbitrary"),
            vmem_limit_bytes=vmem_limit,
        ),
    )(w_flat, xpad)

    # Crop density padding; plane ordering (c, s) -> c*S + s matches PyTorch weights.
    out = out[:, :, :H_out, :W_out].reshape(C * S, H_out, W_out)
    if stride != 1:
        out = out[:, ::stride, ::stride]     # stride-s conv == stride-1 conv subsampled
    # PyTorch forward: gkernel(dotmaps.unsqueeze(0)) -> (1, C*S, H_out, W_out)
    return out[None]


def _reference_forward(dotmaps, sigmalist, kernel_size, stride, padding):
    """Plain-JAX grouped-conv reference mirroring the PyTorch weight layout."""
    C, _, _ = dotmaps.shape
    S = len(sigmalist)
    g1d = [make_gaussian_1d(float(sg), kernel_size) for sg in sigmalist]
    w = jnp.stack([jnp.outer(g, g) for g in g1d])                       # (S, K, K)
    w = jnp.broadcast_to(w[None], (C, S, kernel_size, kernel_size))
    w = w.reshape(C * S, 1, kernel_size, kernel_size).astype(jnp.float32)
    x = dotmaps[None].astype(jnp.float32)                               # (1, C, H, W)
    return jax.lax.conv_general_dilated(
        x, w, (stride, stride), ((padding, padding), (padding, padding)),
        dimension_numbers=("NCHW", "OIHW", "NCHW"),
        feature_group_count=C,
        precision=jax.lax.Precision.HIGHEST,
    )


if __name__ == "__main__":
    key = jax.random.PRNGKey(0)

    # Small shapes consistent with the module's forward: dotmaps is (C, H, W).
    C, H, W = 2, 16, 16
    sigmalist = [4.0, 6.0]          # 2 sigmas -> out_channels = C * 2 = 4
    KERNEL_SIZE = 15
    PADDING = KERNEL_SIZE // 2      # "same" conv, the usual crowd-counting config
    STRIDE = 1

    dotmaps = jax.random.uniform(key, (C, H, W), dtype=jnp.float32)

    denmaps = gaussian_forward(dotmaps, sigmalist, KERNEL_SIZE,
                               stride=STRIDE, padding=PADDING)
    denmaps = jax.block_until_ready(denmaps)

    assert denmaps.shape == (1, C * len(sigmalist), H, W), denmaps.shape

    ref = jax.block_until_ready(
        _reference_forward(dotmaps, sigmalist, KERNEL_SIZE, STRIDE, PADDING))
    assert ref.shape == denmaps.shape, (ref.shape, denmaps.shape)
    assert jnp.allclose(denmaps, ref, rtol=1e-4, atol=1e-5), "mismatch vs reference conv"

    print("KERNEL_OK")
</pallas_src>

<mosaic_0001>
module attributes {stable_mosaic.version = 11 : i64} {
  func.func @kernel(%arg0: i32, %arg1: i32, %arg2: memref<30xf32, #tpu.memory_space<smem>>, %arg3: memref<1x32x256xf32, #tpu.memory_space<vmem>>, %arg4: memref<1x1x16x128xf32, #tpu.memory_space<vmem>>, %arg5: memref<32x128xf32, #tpu.memory_space<vmem>>) attributes {dimension_semantics = [#tpu.dimension_semantics<parallel>, #tpu.dimension_semantics<arbitrary>], iteration_bounds = array<i64: 2, 2>, scalar_prefetch = 0 : i64, scratch_operands = 1 : i64, tpu.core_type = #tpu.core_type<tc>, window_params = [{transform_indices = @transform_0, window_bounds = array<i64: 30>}, {transform_indices = @transform_1, window_bounds = array<i64: 1, 32, 256>}, {transform_indices = @transform_2, window_bounds = array<i64: 1, 1, 16, 128>}]} {
    %c15_i32 = arith.constant 15 : i32
    %0 = arith.muli %arg1, %c15_i32 : i32
    %c0_i32 = arith.constant 0 : i32
    %1 = arith.addi %0, %c0_i32 : i32
    %2 = arith.index_cast %1 : i32 to index
    %3 = memref.load %arg2[%2] : memref<30xf32, #tpu.memory_space<smem>>
    %c1_i32 = arith.constant 1 : i32
    %4 = arith.addi %0, %c1_i32 : i32
    %5 = arith.index_cast %4 : i32 to index
    %6 = memref.load %arg2[%5] : memref<30xf32, #tpu.memory_space<smem>>
    %c2_i32 = arith.constant 2 : i32
    %7 = arith.addi %0, %c2_i32 : i32
    %8 = arith.index_cast %7 : i32 to index
    %9 = memref.load %arg2[%8] : memref<30xf32, #tpu.memory_space<smem>>
    %c3_i32 = arith.constant 3 : i32
    %10 = arith.addi %0, %c3_i32 : i32
    %11 = arith.index_cast %10 : i32 to index
    %12 = memref.load %arg2[%11] : memref<30xf32, #tpu.memory_space<smem>>
    %c4_i32 = arith.constant 4 : i32
    %13 = arith.addi %0, %c4_i32 : i32
    %14 = arith.index_cast %13 : i32 to index
    %15 = memref.load %arg2[%14] : memref<30xf32, #tpu.memory_space<smem>>
    %c5_i32 = arith.constant 5 : i32
    %16 = arith.addi %0, %c5_i32 : i32
    %17 = arith.index_cast %16 : i32 to index
    %18 = memref.load %arg2[%17] : memref<30xf32, #tpu.memory_space<smem>>
    %c6_i32 = arith.constant 6 : i32
    %19 = arith.addi %0, %c6_i32 : i32
    %20 = arith.index_cast %19 : i32 to index
    %21 = memref.load %arg2[%20] : memref<30xf32, #tpu.memory_space<smem>>
    %c7_i32 = arith.constant 7 : i32
    %22 = arith.addi %0, %c7_i32 : i32
    %23 = arith.index_cast %22 : i32 to index
    %24 = memref.load %arg2[%23] : memref<30xf32, #tpu.memory_space<smem>>
    %c8_i32 = arith.constant 8 : i32
    %25 = arith.addi %0, %c8_i32 : i32
    %26 = arith.index_cast %25 : i32 to index
    %27 = memref.load %arg2[%26] : memref<30xf32, #tpu.memory_space<smem>>
    %c9_i32 = arith.constant 9 : i32
    %28 = arith.addi %0, %c9_i32 : i32
    %29 = arith.index_cast %28 : i32 to index
    %30 = memref.load %arg2[%29] : memref<30xf32, #tpu.memory_space<smem>>
    %c10_i32 = arith.constant 10 : i32
    %31 = arith.addi %0, %c10_i32 : i32
    %32 = arith.index_cast %31 : i32 to index
    %33 = memref.load %arg2[%32] : memref<30xf32, #tpu.memory_space<smem>>
    %c11_i32 = arith.constant 11 : i32
    %34 = arith.addi %0, %c11_i32 : i32
    %35 = arith.index_cast %34 : i32 to index
    %36 = memref.load %arg2[%35] : memref<30xf32, #tpu.memory_space<smem>>
    %c12_i32 = arith.constant 12 : i32
    %37 = arith.addi %0, %c12_i32 : i32
    %38 = arith.index_cast %37 : i32 to index
    %39 = memref.load %arg2[%38] : memref<30xf32, #tpu.memory_space<smem>>
    %c13_i32 = arith.constant 13 : i32
    %40 = arith.addi %0, %c13_i32 : i32
    %41 = arith.index_cast %40 : i32 to index
    %42 = memref.load %arg2[%41] : memref<30xf32, #tpu.memory_space<smem>>
    %c14_i32 = arith.constant 14 : i32
    %43 = arith.addi %0, %c14_i32 : i32
    %44 = arith.index_cast %43 : i32 to index
    %45 = memref.load %arg2[%44] : memref<30xf32, #tpu.memory_space<smem>>
    %c0_i32_0 = arith.constant 0 : i32
    %c8_i32_1 = arith.constant 8 : i32
    %46 = arith.muli %c0_i32_0, %c8_i32_1 : i32
    %47 = tpu.assume_multiple %46, 8 : i32
    %c0 = arith.constant 0 : index
    %48 = arith.index_cast %47 : i32 to index
    %c0_2 = arith.constant 0 : index
    %49 = vector.load %arg3[%c0, %48, %c0_2] : memref<1x32x256xf32, #tpu.memory_space<vmem>>, vector<1x8x128xf32>
    %50 = vector.shape_cast %49 : vector<1x8x128xf32> to vector<8x128xf32>
    %51 = vector.broadcast %3 : f32 to vector<8x128xf32>
    %52 = arith.mulf %51, %50 : vector<8x128xf32>
    %c0_3 = arith.constant 0 : index
    %53 = arith.index_cast %47 : i32 to index
    %c1 = arith.constant 1 : index
    %54 = vector.load %arg3[%c0_3, %53, %c1] : memref<1x32x256xf32, #tpu.memory_space<vmem>>, vector<1x8x128xf32>
    %55 = vector.shape_cast %54 : vector<1x8x128xf32> to vector<8x128xf32>
    %56 = vector.broadcast %6 : f32 to vector<8x128xf32>
    %57 = arith.mulf %56, %55 : vector<8x128xf32>
    %58 = arith.addf %52, %57 : vector<8x128xf32>
    %c0_4 = arith.constant 0 : index
    %59 = arith.index_cast %47 : i32 to index
    %c2 = arith.constant 2 : index
    %60 = vector.load %arg3[%c0_4, %59, %c2] : memref<1x32x256xf32, #tpu.memory_space<vmem>>, vector<1x8x128xf32>
    %61 = vector.shape_cast %60 : vector<1x8x128xf32> to vector<8x128xf32>
    %62 = vector.broadcast %9 : f32 to vector<8x128xf32>
    %63 = arith.mulf %62, %61 : vector<8x128xf32>
    %64 = arith.addf %58, %63 : vector<8x128xf32>
    %c0_5 = arith.constant 0 : index
    %65 = arith.index_cast %47 : i32 to index
    %c3 = arith.constant 3 : index
    %66 = vector.load %arg3[%c0_5, %65, %c3] : memref<1x32x256xf32, #tpu.memory_space<vmem>>, vector<1x8x128xf32>
    %67 = vector.shape_cast %66 : vector<1x8x128xf32> to vector<8x128xf32>
    %68 = vector.broadcast %12 : f32 to vector<8x128xf32>
    %69 = arith.mulf %68, %67 : vector<8x128xf32>
    %70 = arith.addf %64, %69 : vector<8x128xf32>
    %c0_6 = arith.constant 0 : index
    %71 = arith.index_cast %47 : i32 to index
    %c4 = arith.constant 4 : index
    %72 = vector.load %arg3[%c0_6, %71, %c4] : memref<1x32x256xf32, #tpu.memory_space<vmem>>, vector<1x8x128xf32>
    %73 = vector.shape_cast %72 : vector<1x8x128xf32> to vector<8x128xf32>
    %74 = vector.broadcast %15 : f32 to vector<8x128xf32>
    %75 = arith.mulf %74, %73 : vector<8x128xf32>
    %76 = arith.addf %70, %75 : vector<8x128xf32>
    %c0_7 = arith.constant 0 : index
    %77 = arith.index_cast %47 : i32 to index
    %c5 = arith.constant 5 : index
    %78 = vector.load %arg3[%c0_7, %77, %c5] : memref<1x32x256xf32, #tpu.memory_space<vmem>>, vector<1x8x128xf32>
    %79 = vector.shape_cast %78 : vector<1x8x128xf32> to vector<8x128xf32>
    %80 = vector.broadcast %18 : f32 to vector<8x128xf32>
    %81 = arith.mulf %80, %79 : vector<8x128xf32>
    %82 = arith.addf %76, %81 : vector<8x128xf32>
    %c0_8 = arith.constant 0 : index
    %83 = arith.index_cast %47 : i32 to index
    %c6 = arith.constant 6 : index
    %84 = vector.load %arg3[%c0_8, %83, %c6] : memref<1x32x256xf32, #tpu.memory_space<vmem>>, vector<1x8x128xf32>
    %85 = vector.shape_cast %84 : vector<1x8x128xf32> to vector<8x128xf32>
    %86 = vector.broadcast %21 : f32 to vector<8x128xf32>
    %87 = arith.mulf %86, %85 : vector<8x128xf32>
    %88 = arith.addf %82, %87 : vector<8x128xf32>
    %c0_9 = arith.constant 0 : index
    %89 = arith.index_cast %47 : i32 to index
    %c7 = arith.constant 7 : index
    %90 = vector.load %arg3[%c0_9, %89, %c7] : memref<1x32x256xf32, #tpu.memory_space<vmem>>, vector<1x8x128xf32>
    %91 = vector.shape_cast %90 : vector<1x8x128xf32> to vector<8x128xf32>
    %92 = vector.broadcast %24 : f32 to vector<8x128xf32>
    %93 = arith.mulf %92, %91 : vector<8x128xf32>
    %94 = arith.addf %88, %93 : vector<8x128xf32>
    %c0_10 = arith.constant 0 : index
    %95 = arith.index_cast %47 : i32 to index
    %c8 = arith.constant 8 : index
    %96 = vector.load %arg3[%c0_10, %95, %c8] : memref<1x32x256xf32, #tpu.memory_space<vmem>>, vector<1x8x128xf32>
    %97 = vector.shape_cast %96 : vector<1x8x128xf32> to vector<8x128xf32>
    %98 = vector.broadcast %27 : f32 to vector<8x128xf32>
    %99 = arith.mulf %98, %97 : vector<8x128xf32>
    %100 = arith.addf %94, %99 : vector<8x128xf32>
    %c0_11 = arith.constant 0 : index
    %101 = arith.index_cast %47 : i32 to index
    %c9 = arith.constant 9 : index
    %102 = vector.load %arg3[%c0_11, %101, %c9] : memref<1x32x256xf32, #tpu.memory_space<vmem>>, vector<1x8x128xf32>
    %103 = vector.shape_cast %102 : vector<1x8x128xf32> to vector<8x128xf32>
    %104 = vector.broadcast %30 : f32 to vector<8x128xf32>
    %105 = arith.mulf %104, %103 : vector<8x128xf32>
    %106 = arith.addf %100, %105 : vector<8x128xf32>
    %c0_12 = arith.constant 0 : index
    %107 = arith.index_cast %47 : i32 to index
    %c10 = arith.constant 10 : index
    %108 = vector.load %arg3[%c0_12, %107, %c10] : memref<1x32x256xf32, #tpu.memory_space<vmem>>, vector<1x8x128xf32>
    %109 = vector.shape_cast %108 : vector<1x8x128xf32> to vector<8x128xf32>
    %110 = vector.broadcast %33 : f32 to vector<8x128xf32>
    %111 = arith.mulf %110, %109 : vector<8x128xf32>
    %112 = arith.addf %106, %111 : vector<8x128xf32>
    %c0_13 = arith.constant 0 : index
    %113 = arith.index_cast %47 : i32 to index
    %c11 = arith.constant 11 : index
    %114 = vector.load %arg3[%c0_13, %113, %c11] : memref<1x32x256xf32, #tpu.memory_space<vmem>>, vector<1x8x128xf32>
    %115 = vector.shape_cast %114 : vector<1x8x128xf32> to vector<8x128xf32>
    %116 = vector.broadcast %36 : f32 to vector<8x128xf32>
    %117 = arith.mulf %116, %115 : vector<8x128xf32>
    %118 = arith.addf %112, %117 : vector<8x128xf32>
    %c0_14 = arith.constant 0 : index
    %119 = arith.index_cast %47 : i32 to index
    %c12 = arith.constant 12 : index
    %120 = vector.load %arg3[%c0_14, %119, %c12] : memref<1x32x256xf32, #tpu.memory_space<vmem>>, vector<1x8x128xf32>
    %121 = vector.shape_cast %120 : vector<1x8x128xf32> to vector<8x128xf32>
    %122 = vector.broadcast %39 : f32 to vector<8x128xf32>
    %123 = arith.mulf %122, %121 : vector<8x128xf32>
    %124 = arith.addf %118, %123 : vector<8x128xf32>
    %c0_15 = arith.constant 0 : index
    %125 = arith.index_cast %47 : i32 to index
    %c13 = arith.constant 13 : index
    %126 = vector.load %arg3[%c0_15, %125, %c13] : memref<1x32x256xf32, #tpu.memory_space<vmem>>, vector<1x8x128xf32>
    %127 = vector.shape_cast %126 : vector<1x8x128xf32> to vector<8x128xf32>
    %128 = vector.broadcast %42 : f32 to vector<8x128xf32>
    %129 = arith.mulf %128, %127 : vector<8x128xf32>
    %130 = arith.addf %124, %129 : vector<8x128xf32>
    %c0_16 = arith.constant 0 : index
    %131 = arith.index_cast %47 : i32 to index
    %c14 = arith.constant 14 : index
    %132 = vector.load %arg3[%c0_16, %131, %c14] : memref<1x32x256xf32, #tpu.memory_space<vmem>>, vector<1x8x128xf32>
    %133 = vector.shape_cast %132 : vector<1x8x128xf32> to vector<8x128xf32>
    %134 = vector.broadcast %45 : f32 to vector<8x128xf32>
    %135 = arith.mulf %134, %133 : vector<8x128xf32>
    %136 = arith.addf %130, %135 : vector<8x128xf32>
    %137 = arith.index_cast %47 : i32 to index
    %c0_17 = arith.constant 0 : index
    %138 = vector.load %arg5[%137, %c0_17] : memref<32x128xf32, #tpu.memory_space<vmem>>, vector<8x128xf32>
    tpu.vector_store %arg5[%137, %c0_17], %136 {strides = array<i32>} : memref<32x128xf32, #tpu.memory_space<vmem>>, vector<8x128xf32>,
    %c1_i32_18 = arith.constant 1 : i32
    %c8_i32_19 = arith.constant 8 : i32
    %139 = arith.muli %c1_i32_18, %c8_i32_19 : i32
    %140 = tpu.assume_multiple %139, 8 : i32
    %c0_20 = arith.constant 0 : index
    %141 = arith.index_cast %140 : i32 to index
    %c0_21 = arith.constant 0 : index
    %142 = vector.load %arg3[%c0_20, %141, %c0_21] : memref<1x32x256xf32, #tpu.memory_space<vmem>>, vector<1x8x128xf32>
    %143 = vector.shape_cast %142 : vector<1x8x128xf32> to vector<8x128xf32>
    %144 = vector.broadcast %3 : f32 to vector<8x128xf32>
    %145 = arith.mulf %144, %143 : vector<8x128xf32>
    %c0_22 = arith.constant 0 : index
    %146 = arith.index_cast %140 : i32 to index
    %c1_23 = arith.constant 1 : index
    %147 = vector.load %arg3[%c0_22, %146, %c1_23] : memref<1x32x256xf32, #tpu.memory_space<vmem>>, vector<1x8x128xf32>
    %148 = vector.shape_cast %147 : vector<1x8x128xf32> to vector<8x128xf32>
    %149 = vector.broadcast %6 : f32 to vector<8x128xf32>
    %150 = arith.mulf %149, %148 : vector<8x128xf32>
    %151 = arith.addf %145, %150 : vector<8x128xf32>
    %c0_24 = arith.constant 0 : index
    %152 = arith.index_cast %140 : i32 to index
    %c2_25 = arith.constant 2 : index
    %153 = vector.load %arg3[%c0_24, %152, %c2_25] : memref<1x32x256xf32, #tpu.memory_space<vmem>>, vector<1x8x128xf32>
    %154 = vector.shape_cast %153 : vector<1x8x128xf32> to vector<8x128xf32>
    %155 = vector.broadcast %9 : f32 to vector<8x128xf32>
    %156 = arith.mulf %155, %154 : vector<8x128xf32>
    %157 = arith.addf %151, %156 : vector<8x128xf32>
    %c0_26 = arith.constant 0 : index
    %158 = arith.index_cast %140 : i32 to index
    %c3_27 = arith.constant 3 : index
    %159 = vector.load %arg3[%c0_26, %158, %c3_27] : memref<1x32x256xf32, #tpu.memory_space<vmem>>, vector<1x8x128xf32>
    %160 = vector.shape_cast %159 : vector<1x8x128xf32> to vector<8x128xf32>
    %161 = vector.broadcast %12 : f32 to vector<8x128xf32>
    %162 = arith.mulf %161, %160 : vector<8x128xf32>
    %163 = arith.addf %157, %162 : vector<8x128xf32>
    %c0_28 = arith.constant 0 : index
    %164 = arith.index_cast %140 : i32 to index
    %c4_29 = arith.constant 4 : index
    %165 = vector.load %arg3[%c0_28, %164, %c4_29] : memref<1x32x256xf32, #tpu.memory_space<vmem>>, vector<1x8x128xf32>
    %166 = vector.shape_cast %165 : vector<1x8x128xf32> to vector<8x128xf32>
    %167 = vector.broadcast %15 : f32 to vector<8x128xf32>
    %168 = arith.mulf %167, %166 : vector<8x128xf32>
    %169 = arith.addf %163, %168 : vector<8x128xf32>
    %c0_30 = arith.constant 0 : index
    %170 = arith.index_cast %140 : i32 to index
    %c5_31 = arith.constant 5 : index
    %171 = vector.load %arg3[%c0_30, %170, %c5_31] : memref<1x32x256xf32, #tpu.memory_space<vmem>>, vector<1x8x128xf32>
    %172 = vector.shape_cast %171 : vector<1x8x128xf32> to vector<8x128xf32>
    %173 = vector.broadcast %18 : f32 to vector<8x128xf32>
    %174 = arith.mulf %173, %172 : vector<8x128xf32>
    %175 = arith.addf %169, %174 : vector<8x128xf32>
    %c0_32 = arith.constant 0 : index
    %176 = arith.index_cast %140 : i32 to index
    %c6_33 = arith.constant 6 : index
    %177 = vector.load %arg3[%c0_32, %176, %c6_33] : memref<1x32x256xf32, #tpu.memory_space<vmem>>, vector<1x8x128xf32>
    %178 = vector.shape_cast %177 : vector<1x8x128xf32> to vector<8x128xf32>
    %179 = vector.broadcast %21 : f32 to vector<8x128xf32>
    %180 = arith.mulf %179, %178 : vector<8x128xf32>
    %181 = arith.addf %175, %180 : vector<8x128xf32>
    %c0_34 = arith.constant 0 : index
    %182 = arith.index_cast %140 : i32 to index
    %c7_35 = arith.constant 7 : index
    %183 = vector.load %arg3[%c0_34, %182, %c7_35] : memref<1x32x256xf32, #tpu.memory_space<vmem>>, vector<1x8x128xf32>
    %184 = vector.shape_cast %183 : vector<1x8x128xf32> to vector<8x128xf32>
    %185 = vector.broadcast %24 : f32 to vector<8x128xf32>
    %186 = arith.mulf %185, %184 : vector<8x128xf32>
    %187 = arith.addf %181, %186 : vector<8x128xf32>
    %c0_36 = arith.constant 0 : index
    %188 = arith.index_cast %140 : i32 to index
    %c8_37 = arith.constant 8 : index
    %189 = vector.load %arg3[%c0_36, %188, %c8_37] : memref<1x32x256xf32, #tpu.memory_space<vmem>>, vector<1x8x128xf32>
    %190 = vector.shape_cast %189 : vector<1x8x128xf32> to vector<8x128xf32>
    %191 = vector.broadcast %27 : f32 to vector<8x128xf32>
    %192 = arith.mulf %191, %190 : vector<8x128xf32>
    %193 = arith.addf %187, %192 : vector<8x128xf32>
    %c0_38 = arith.constant 0 : index
    %194 = arith.index_cast %140 : i32 to index
    %c9_39 = arith.constant 9 : index
    %195 = vector.load %arg3[%c0_38, %194, %c9_39] : memref<1x32x256xf32, #tpu.memory_space<vmem>>, vector<1x8x128xf32>
    %196 = vector.shape_cast %195 : vector<1x8x128xf32> to vector<8x128xf32>
    %197 = vector.broadcast %30 : f32 to vector<8x128xf32>
    %198 = arith.mulf %197, %196 : vector<8x128xf32>
    %199 = arith.addf %193, %198 : vector<8x128xf32>
    %c0_40 = arith.constant 0 : index
    %200 = arith.index_cast %140 : i32 to index
    %c10_41 = arith.constant 10 : index
    %201 = vector.load %arg3[%c0_40, %200, %c10_41] : memref<1x32x256xf32, #tpu.memory_space<vmem>>, vector<1x8x128xf32>
    %202 = vector.shape_cast %201 : vector<1x8x128xf32> to vector<8x128xf32>
    %203 = vector.broadcast %33 : f32 to vector<8x128xf32>
    %204 = arith.mulf %203, %202 : vector<8x128xf32>
    %205 = arith.addf %199, %204 : vector<8x128xf32>
    %c0_42 = arith.constant 0 : index
    %206 = arith.index_cast %140 : i32 to index
    %c11_43 = arith.constant 11 : index
    %207 = vector.load %arg3[%c0_42, %206, %c11_43] : memref<1x32x256xf32, #tpu.memory_space<vmem>>, vector<1x8x128xf32>
    %208 = vector.shape_cast %207 : vector<1x8x128xf32> to vector<8x128xf32>
    %209 = vector.broadcast %36 : f32 to vector<8x128xf32>
    %210 = arith.mulf %209, %208 : vector<8x128xf32>
    %211 = arith.addf %205, %210 : vector<8x128xf32>
    %c0_44 = arith.constant 0 : index
    %212 = arith.index_cast %140 : i32 to index
    %c12_45 = arith.constant 12 : index
    %213 = vector.load %arg3[%c0_44, %212, %c12_45] : memref<1x32x256xf32, #tpu.memory_space<vmem>>, vector<1x8x128xf32>
    %214 = vector.shape_cast %213 : vector<1x8x128xf32> to vector<8x128xf32>
    %215 = vector.broadcast %39 : f32 to vector<8x128xf32>
    %216 = arith.mulf %215, %214 : vector<8x128xf32>
    %217 = arith.addf %211, %216 : vector<8x128xf32>
    %c0_46 = arith.constant 0 : index
    %218 = arith.index_cast %140 : i32 to index
    %c13_47 = arith.constant 13 : index
    %219 = vector.load %arg3[%c0_46, %218, %c13_47] : memref<1x32x256xf32, #tpu.memory_space<vmem>>, vector<1x8x128xf32>
    %220 = vector.shape_cast %219 : vector<1x8x128xf32> to vector<8x128xf32>
    %221 = vector.broadcast %42 : f32 to vector<8x128xf32>
    %222 = arith.mulf %221, %220 : vector<8x128xf32>
    %223 = arith.addf %217, %222 : vector<8x128xf32>
    %c0_48 = arith.constant 0 : index
    %224 = arith.index_cast %140 : i32 to index
    %c14_49 = arith.constant 14 : index
    %225 = vector.load %arg3[%c0_48, %224, %c14_49] : memref<1x32x256xf32, #tpu.memory_space<vmem>>, vector<1x8x128xf32>
    %226 = vector.shape_cast %225 : vector<1x8x128xf32> to vector<8x128xf32>
    %227 = vector.broadcast %45 : f32 to vector<8x128xf32>
    %228 = arith.mulf %227, %226 : vector<8x128xf32>
    %229 = arith.addf %223, %228 : vector<8x128xf32>
    %230 = arith.index_cast %140 : i32 to index
    %c0_50 = arith.constant 0 : index
    %231 = vector.load %arg5[%230, %c0_50] : memref<32x128xf32, #tpu.memory_space<vmem>>, vector<8x128xf32>
    tpu.vector_store %arg5[%230, %c0_50], %229 {strides = array<i32>} : memref<32x128xf32, #tpu.memory_space<vmem>>, vector<8x128xf32>,
    %c2_i32_51 = arith.constant 2 : i32
    %c8_i32_52 = arith.constant 8 : i32
    %232 = arith.muli %c2_i32_51, %c8_i32_52 : i32
    %233 = tpu.assume_multiple %232, 8 : i32
    %c0_53 = arith.constant 0 : index
    %234 = arith.index_cast %233 : i32 to index
    %c0_54 = arith.constant 0 : index
    %235 = vector.load %arg3[%c0_53, %234, %c0_54] : memref<1x32x256xf32, #tpu.memory_space<vmem>>, vector<1x8x128xf32>
    %236 = vector.shape_cast %235 : vector<1x8x128xf32> to vector<8x128xf32>
    %237 = vector.broadcast %3 : f32 to vector<8x128xf32>
    %238 = arith.mulf %237, %236 : vector<8x128xf32>
    %c0_55 = arith.constant 0 : index
    %239 = arith.index_cast %233 : i32 to index
    %c1_56 = arith.constant 1 : index
    %240 = vector.load %arg3[%c0_55, %239, %c1_56] : memref<1x32x256xf32, #tpu.memory_space<vmem>>, vector<1x8x128xf32>
    %241 = vector.shape_cast %240 : vector<1x8x128xf32> to vector<8x128xf32>
    %242 = vector.broadcast %6 : f32 to vector<8x128xf32>
    %243 = arith.mulf %242, %241 : vector<8x128xf32>
    %244 = arith.addf %238, %243 : vector<8x128xf32>
    %c0_57 = arith.constant 0 : index
    %245 = arith.index_cast %233 : i32 to index
    %c2_58 = arith.constant 2 : index
    %246 = vector.load %arg3[%c0_57, %245, %c2_58] : memref<1x32x256xf32, #tpu.memory_space<vmem>>, vector<1x8x128xf32>
    %247 = vector.shape_cast %246 : vector<1x8x128xf32> to vector<8x128xf32>
    %248 = vector.broadcast %9 : f32 to vector<8x128xf32>
    %249 = arith.mulf %248, %247 : vector<8x128xf32>
    %250 = arith.addf %244, %249 : vector<8x128xf32>
    %c0_59 = arith.constant 0 : index
    %251 = arith.index_cast %233 : i32 to index
    %c3_60 = arith.constant 3 : index
    %252 = vector.load %arg3[%c0_59, %251, %c3_60] : memref<1x32x256xf32, #tpu.memory_space<vmem>>, vector<1x8x128xf32>
    %253 = vector.shape_cast %252 : vector<1x8x128xf32> to vector<8x128xf32>
    %254 = vector.broadcast %12 : f32 to vector<8x128xf32>
    %255 = arith.mulf %254, %253 : vector<8x128xf32>
    %256 = arith.addf %250, %255 : vector<8x128xf32>
    %c0_61 = arith.constant 0 : index
    %257 = arith.index_cast %233 : i32 to index
    %c4_62 = arith.constant 4 : index
    %258 = vector.load %arg3[%c0_61, %257, %c4_62] : memref<1x32x256xf32, #tpu.memory_space<vmem>>, vector<1x8x128xf32>
    %259 = vector.shape_cast %258 : vector<1x8x128xf32> to vector<8x128xf32>
    %260 = vector.broadcast %15 : f32 to vector<8x128xf32>
    %261 = arith.mulf %260, %259 : vector<8x128xf32>
    %262 = arith.addf %256, %261 : vector<8x128xf32>
    %c0_63 = arith.constant 0 : index
    %263 = arith.index_cast %233 : i32 to index
    %c5_64 = arith.constant 5 : index
    %264 = vector.load %arg3[%c0_63, %263, %c5_64] : memref<1x32x256xf32, #tpu.memory_space<vmem>>, vector<1x8x128xf32>
    %265 = vector.shape_cast %264 : vector<1x8x128xf32> to vector<8x128xf32>
    %266 = vector.broadcast %18 : f32 to vector<8x128xf32>
    %267 = arith.mulf %266, %265 : vector<8x128xf32>
    %268 = arith.addf %262, %267 : vector<8x128xf32>
    %c0_65 = arith.constant 0 : index
    %269 = arith.index_cast %233 : i32 to index
    %c6_66 = arith.constant 6 : index
    %270 = vector.load %arg3[%c0_65, %269, %c6_66] : memref<1x32x256xf32, #tpu.memory_space<vmem>>, vector<1x8x128xf32>
    %271 = vector.shape_cast %270 : vector<1x8x128xf32> to vector<8x128xf32>
    %272 = vector.broadcast %21 : f32 to vector<8x128xf32>
    %273 = arith.mulf %272, %271 : vector<8x128xf32>
    %274 = arith.addf %268, %273 : vector<8x128xf32>
    %c0_67 = arith.constant 0 : index
    %275 = arith.index_cast %233 : i32 to index
    %c7_68 = arith.constant 7 : index
    %276 = vector.load %arg3[%c0_67, %275, %c7_68] : memref<1x32x256xf32, #tpu.memory_space<vmem>>, vector<1x8x128xf32>
    %277 = vector.shape_cast %276 : vector<1x8x128xf32> to vector<8x128xf32>
    %278 = vector.broadcast %24 : f32 to vector<8x128xf32>
    %279 = arith.mulf %278, %277 : vector<8x128xf32>
    %280 = arith.addf %274, %279 : vector<8x128xf32>
    %c0_69 = arith.constant 0 : index
    %281 = arith.index_cast %233 : i32 to index
    %c8_70 = arith.constant 8 : index
    %282 = vector.load %arg3[%c0_69, %281, %c8_70] : memref<1x32x256xf32, #tpu.memory_space<vmem>>, vector<1x8x128xf32>
    %283 = vector.shape_cast %282 : vector<1x8x128xf32> to vector<8x128xf32>
    %284 = vector.broadcast %27 : f32 to vector<8x128xf32>
    %285 = arith.mulf %284, %283 : vector<8x128xf32>
    %286 = arith.addf %280, %285 : vector<8x128xf32>
    %c0_71 = arith.constant 0 : index
    %287 = arith.index_cast %233 : i32 to index
    %c9_72 = arith.constant 9 : index
    %288 = vector.load %arg3[%c0_71, %287, %c9_72] : memref<1x32x256xf32, #tpu.memory_space<vmem>>, vector<1x8x128xf32>
    %289 = vector.shape_cast %288 : vector<1x8x128xf32> to vector<8x128xf32>
    %290 = vector.broadcast %30 : f32 to vector<8x128xf32>
    %291 = arith.mulf %290, %289 : vector<8x128xf32>
    %292 = arith.addf %286, %291 : vector<8x128xf32>
    %c0_73 = arith.constant 0 : index
    %293 = arith.index_cast %233 : i32 to index
    %c10_74 = arith.constant 10 : index
    %294 = vector.load %arg3[%c0_73, %293, %c10_74] : memref<1x32x256xf32, #tpu.memory_space<vmem>>, vector<1x8x128xf32>
    %295 = vector.shape_cast %294 : vector<1x8x128xf32> to vector<8x128xf32>
    %296 = vector.broadcast %33 : f32 to vector<8x128xf32>
    %297 = arith.mulf %296, %295 : vector<8x128xf32>
    %298 = arith.addf %292, %297 : vector<8x128xf32>
    %c0_75 = arith.constant 0 : index
    %299 = arith.index_cast %233 : i32 to index
    %c11_76 = arith.constant 11 : index
    %300 = vector.load %arg3[%c0_75, %299, %c11_76] : memref<1x32x256xf32, #tpu.memory_space<vmem>>, vector<1x8x128xf32>
    %301 = vector.shape_cast %300 : vector<1x8x128xf32> to vector<8x128xf32>
    %302 = vector.broadcast %36 : f32 to vector<8x128xf32>
    %303 = arith.mulf %302, %301 : vector<8x128xf32>
    %304 = arith.addf %298, %303 : vector<8x128xf32>
    %c0_77 = arith.constant 0 : index
    %305 = arith.index_cast %233 : i32 to index
    %c12_78 = arith.constant 12 : index
    %306 = vector.load %arg3[%c0_77, %305, %c12_78] : memref<1x32x256xf32, #tpu.memory_space<vmem>>, vector<1x8x128xf32>
    %307 = vector.shape_cast %306 : vector<1x8x128xf32> to vector<8x128xf32>
    %308 = vector.broadcast %39 : f32 to vector<8x128xf32>
    %309 = arith.mulf %308, %307 : vector<8x128xf32>
    %310 = arith.addf %304, %309 : vector<8x128xf32>
    %c0_79 = arith.constant 0 : index
    %311 = arith.index_cast %233 : i32 to index
    %c13_80 = arith.constant 13 : index
    %312 = vector.load %arg3[%c0_79, %311, %c13_80] : memref<1x32x256xf32, #tpu.memory_space<vmem>>, vector<1x8x128xf32>
    %313 = vector.shape_cast %312 : vector<1x8x128xf32> to vector<8x128xf32>
    %314 = vector.broadcast %42 : f32 to vector<8x128xf32>
    %315 = arith.mulf %314, %313 : vector<8x128xf32>
    %316 = arith.addf %310, %315 : vector<8x128xf32>
    %c0_81 = arith.constant 0 : index
    %317 = arith.index_cast %233 : i32 to index
    %c14_82 = arith.constant 14 : index
    %318 = vector.load %arg3[%c0_81, %317, %c14_82] : memref<1x32x256xf32, #tpu.memory_space<vmem>>, vector<1x8x128xf32>
    %319 = vector.shape_cast %318 : vector<1x8x128xf32> to vector<8x128xf32>
    %320 = vector.broadcast %45 : f32 to vector<8x128xf32>
    %321 = arith.mulf %320, %319 : vector<8x128xf32>
    %322 = arith.addf %316, %321 : vector<8x128xf32>
    %323 = arith.index_cast %233 : i32 to index
    %c0_83 = arith.constant 0 : index
    %324 = vector.load %arg5[%323, %c0_83] : memref<32x128xf32, #tpu.memory_space<vmem>>, vector<8x128xf32>
    tpu.vector_store %arg5[%323, %c0_83], %322 {strides = array<i32>} : memref<32x128xf32, #tpu.memory_space<vmem>>, vector<8x128xf32>,
    %c3_i32_84 = arith.constant 3 : i32
    %c8_i32_85 = arith.constant 8 : i32
    %325 = arith.muli %c3_i32_84, %c8_i32_85 : i32
    %326 = tpu.assume_multiple %325, 8 : i32
    %c0_86 = arith.constant 0 : index
    %327 = arith.index_cast %326 : i32 to index
    %c0_87 = arith.constant 0 : index
    %328 = vector.load %arg3[%c0_86, %327, %c0_87] : memref<1x32x256xf32, #tpu.memory_space<vmem>>, vector<1x8x128xf32>
    %329 = vector.shape_cast %328 : vector<1x8x128xf32> to vector<8x128xf32>
    %330 = vector.broadcast %3 : f32 to vector<8x128xf32>
    %331 = arith.mulf %330, %329 : vector<8x128xf32>
    %c0_88 = arith.constant 0 : index
    %332 = arith.index_cast %326 : i32 to index
    %c1_89 = arith.constant 1 : index
    %333 = vector.load %arg3[%c0_88, %332, %c1_89] : memref<1x32x256xf32, #tpu.memory_space<vmem>>, vector<1x8x128xf32>
    %334 = vector.shape_cast %333 : vector<1x8x128xf32> to vector<8x128xf32>
    %335 = vector.broadcast %6 : f32 to vector<8x128xf32>
    %336 = arith.mulf %335, %334 : vector<8x128xf32>
    %337 = arith.addf %331, %336 : vector<8x128xf32>
    %c0_90 = arith.constant 0 : index
    %338 = arith.index_cast %326 : i32 to index
    %c2_91 = arith.constant 2 : index
    %339 = vector.load %arg3[%c0_90, %338, %c2_91] : memref<1x32x256xf32, #tpu.memory_space<vmem>>, vector<1x8x128xf32>
    %340 = vector.shape_cast %339 : vector<1x8x128xf32> to vector<8x128xf32>
    %341 = vector.broadcast %9 : f32 to vector<8x128xf32>
    %342 = arith.mulf %341, %340 : vector<8x128xf32>
    %343 = arith.addf %337, %342 : vector<8x128xf32>
    %c0_92 = arith.constant 0 : index
    %344 = arith.index_cast %326 : i32 to index
    %c3_93 = arith.constant 3 : index
    %345 = vector.load %arg3[%c0_92, %344, %c3_93] : memref<1x32x256xf32, #tpu.memory_space<vmem>>, vector<1x8x128xf32>
    %346 = vector.shape_cast %345 : vector<1x8x128xf32> to vector<8x128xf32>
    %347 = vector.broadcast %12 : f32 to vector<8x128xf32>
    %348 = arith.mulf %347, %346 : vector<8x128xf32>
    %349 = arith.addf %343, %348 : vector<8x128xf32>
    %c0_94 = arith.constant 0 : index
    %350 = arith.index_cast %326 : i32 to index
    %c4_95 = arith.constant 4 : index
    %351 = vector.load %arg3[%c0_94, %350, %c4_95] : memref<1x32x256xf32, #tpu.memory_space<vmem>>, vector<1x8x128xf32>
    %352 = vector.shape_cast %351 : vector<1x8x128xf32> to vector<8x128xf32>
    %353 = vector.broadcast %15 : f32 to vector<8x128xf32>
    %354 = arith.mulf %353, %352 : vector<8x128xf32>
    %355 = arith.addf %349, %354 : vector<8x128xf32>
    %c0_96 = arith.constant 0 : index
    %356 = arith.index_cast %326 : i32 to index
    %c5_97 = arith.constant 5 : index
    %357 = vector.load %arg3[%c0_96, %356, %c5_97] : memref<1x32x256xf32, #tpu.memory_space<vmem>>, vector<1x8x128xf32>
    %358 = vector.shape_cast %357 : vector<1x8x128xf32> to vector<8x128xf32>
    %359 = vector.broadcast %18 : f32 to vector<8x128xf32>
    %360 = arith.mulf %359, %358 : vector<8x128xf32>
    %361 = arith.addf %355, %360 : vector<8x128xf32>
    %c0_98 = arith.constant 0 : index
    %362 = arith.index_cast %326 : i32 to index
    %c6_99 = arith.constant 6 : index
    %363 = vector.load %arg3[%c0_98, %362, %c6_99] : memref<1x32x256xf32, #tpu.memory_space<vmem>>, vector<1x8x128xf32>
    %364 = vector.shape_cast %363 : vector<1x8x128xf32> to vector<8x128xf32>
    %365 = vector.broadcast %21 : f32 to vector<8x128xf32>
    %366 = arith.mulf %365, %364 : vector<8x128xf32>
    %367 = arith.addf %361, %366 : vector<8x128xf32>
    %c0_100 = arith.constant 0 : index
    %368 = arith.index_cast %326 : i32 to index
    %c7_101 = arith.constant 7 : index
    %369 = vector.load %arg3[%c0_100, %368, %c7_101] : memref<1x32x256xf32, #tpu.memory_space<vmem>>, vector<1x8x128xf32>
    %370 = vector.shape_cast %369 : vector<1x8x128xf32> to vector<8x128xf32>
    %371 = vector.broadcast %24 : f32 to vector<8x128xf32>
    %372 = arith.mulf %371, %370 : vector<8x128xf32>
    %373 = arith.addf %367, %372 : vector<8x128xf32>
    %c0_102 = arith.constant 0 : index
    %374 = arith.index_cast %326 : i32 to index
    %c8_103 = arith.constant 8 : index
    %375 = vector.load %arg3[%c0_102, %374, %c8_103] : memref<1x32x256xf32, #tpu.memory_space<vmem>>, vector<1x8x128xf32>
    %376 = vector.shape_cast %375 : vector<1x8x128xf32> to vector<8x128xf32>
    %377 = vector.broadcast %27 : f32 to vector<8x128xf32>
    %378 = arith.mulf %377, %376 : vector<8x128xf32>
    %379 = arith.addf %373, %378 : vector<8x128xf32>
    %c0_104 = arith.constant 0 : index
    %380 = arith.index_cast %326 : i32 to index
    %c9_105 = arith.constant 9 : index
    %381 = vector.load %arg3[%c0_104, %380, %c9_105] : memref<1x32x256xf32, #tpu.memory_space<vmem>>, vector<1x8x128xf32>
    %382 = vector.shape_cast %381 : vector<1x8x128xf32> to vector<8x128xf32>
    %383 = vector.broadcast %30 : f32 to vector<8x128xf32>
    %384 = arith.mulf %383, %382 : vector<8x128xf32>
    %385 = arith.addf %379, %384 : vector<8x128xf32>
    %c0_106 = arith.constant 0 : index
    %386 = arith.index_cast %326 : i32 to index
    %c10_107 = arith.constant 10 : index
    %387 = vector.load %arg3[%c0_106, %386, %c10_107] : memref<1x32x256xf32, #tpu.memory_space<vmem>>, vector<1x8x128xf32>
    %388 = vector.shape_cast %387 : vector<1x8x128xf32> to vector<8x128xf32>
    %389 = vector.broadcast %33 : f32 to vector<8x128xf32>
    %390 = arith.mulf %389, %388 : vector<8x128xf32>
    %391 = arith.addf %385, %390 : vector<8x128xf32>
    %c0_108 = arith.constant 0 : index
    %392 = arith.index_cast %326 : i32 to index
    %c11_109 = arith.constant 11 : index
    %393 = vector.load %arg3[%c0_108, %392, %c11_109] : memref<1x32x256xf32, #tpu.memory_space<vmem>>, vector<1x8x128xf32>
    %394 = vector.shape_cast %393 : vector<1x8x128xf32> to vector<8x128xf32>
    %395 = vector.broadcast %36 : f32 to vector<8x128xf32>
    %396 = arith.mulf %395, %394 : vector<8x128xf32>
    %397 = arith.addf %391, %396 : vector<8x128xf32>
    %c0_110 = arith.constant 0 : index
    %398 = arith.index_cast %326 : i32 to index
    %c12_111 = arith.constant 12 : index
    %399 = vector.load %arg3[%c0_110, %398, %c12_111] : memref<1x32x256xf32, #tpu.memory_space<vmem>>, vector<1x8x128xf32>
    %400 = vector.shape_cast %399 : vector<1x8x128xf32> to vector<8x128xf32>
    %401 = vector.broadcast %39 : f32 to vector<8x128xf32>
    %402 = arith.mulf %401, %400 : vector<8x128xf32>
    %403 = arith.addf %397, %402 : vector<8x128xf32>
    %c0_112 = arith.constant 0 : index
    %404 = arith.index_cast %326 : i32 to index
    %c13_113 = arith.constant 13 : index
    %405 = vector.load %arg3[%c0_112, %404, %c13_113] : memref<1x32x256xf32, #tpu.memory_space<vmem>>, vector<1x8x128xf32>
    %406 = vector.shape_cast %405 : vector<1x8x128xf32> to vector<8x128xf32>
    %407 = vector.broadcast %42 : f32 to vector<8x128xf32>
    %408 = arith.mulf %407, %406 : vector<8x128xf32>
    %409 = arith.addf %403, %408 : vector<8x128xf32>
    %c0_114 = arith.constant 0 : index
    %410 = arith.index_cast %326 : i32 to index
    %c14_115 = arith.constant 14 : index
    %411 = vector.load %arg3[%c0_114, %410, %c14_115] : memref<1x32x256xf32, #tpu.memory_space<vmem>>, vector<1x8x128xf32>
    %412 = vector.shape_cast %411 : vector<1x8x128xf32> to vector<8x128xf32>
    %413 = vector.broadcast %45 : f32 to vector<8x128xf32>
    %414 = arith.mulf %413, %412 : vector<8x128xf32>
    %415 = arith.addf %409, %414 : vector<8x128xf32>
    %416 = arith.index_cast %326 : i32 to index
    %c0_116 = arith.constant 0 : index
    %417 = vector.load %arg5[%416, %c0_116] : memref<32x128xf32, #tpu.memory_space<vmem>>, vector<8x128xf32>
    tpu.vector_store %arg5[%416, %c0_116], %415 {strides = array<i32>} : memref<32x128xf32, #tpu.memory_space<vmem>>, vector<8x128xf32>,
    %c4_i32_117 = arith.constant 4 : i32
    %c0_i32_118 = arith.constant 0 : i32
    %c8_i32_119 = arith.constant 8 : i32
    %418 = arith.muli %c0_i32_118, %c8_i32_119 : i32
    %419 = tpu.assume_multiple %418, 8 : i32
    %420 = arith.index_cast %419 : i32 to index
    %c0_120 = arith.constant 0 : index
    %421 = vector.load %arg5[%420, %c0_120] : memref<32x128xf32, #tpu.memory_space<vmem>>, vector<8x128xf32>
    %422 = vector.broadcast %3 : f32 to vector<8x128xf32>
    %423 = arith.mulf %422, %421 : vector<8x128xf32>
    %c1_i32_121 = arith.constant 1 : i32
    %424 = arith.addi %419, %c1_i32_121 : i32
    %425 = arith.index_cast %424 : i32 to index
    %c0_122 = arith.constant 0 : index
    %426 = vector.load %arg5[%425, %c0_122] : memref<32x128xf32, #tpu.memory_space<vmem>>, vector<8x128xf32>
    %427 = vector.broadcast %6 : f32 to vector<8x128xf32>
    %428 = arith.mulf %427, %426 : vector<8x128xf32>
    %429 = arith.addf %423, %428 : vector<8x128xf32>
    %c2_i32_123 = arith.constant 2 : i32
    %430 = arith.addi %419, %c2_i32_123 : i32
    %431 = arith.index_cast %430 : i32 to index
    %c0_124 = arith.constant 0 : index
    %432 = vector.load %arg5[%431, %c0_124] : memref<32x128xf32, #tpu.memory_space<vmem>>, vector<8x128xf32>
    %433 = vector.broadcast %9 : f32 to vector<8x128xf32>
    %434 = arith.mulf %433, %432 : vector<8x128xf32>
    %435 = arith.addf %429, %434 : vector<8x128xf32>
    %c3_i32_125 = arith.constant 3 : i32
    %436 = arith.addi %419, %c3_i32_125 : i32
    %437 = arith.index_cast %436 : i32 to index
    %c0_126 = arith.constant 0 : index
    %438 = vector.load %arg5[%437, %c0_126] : memref<32x128xf32, #tpu.memory_space<vmem>>, vector<8x128xf32>
    %439 = vector.broadcast %12 : f32 to vector<8x128xf32>
    %440 = arith.mulf %439, %438 : vector<8x128xf32>
    %441 = arith.addf %435, %440 : vector<8x128xf32>
    %c4_i32_127 = arith.constant 4 : i32
    %442 = arith.addi %419, %c4_i32_127 : i32
    %443 = arith.index_cast %442 : i32 to index
    %c0_128 = arith.constant 0 : index
    %444 = vector.load %arg5[%443, %c0_128] : memref<32x128xf32, #tpu.memory_space<vmem>>, vector<8x128xf32>
    %445 = vector.broadcast %15 : f32 to vector<8x128xf32>
    %446 = arith.mulf %445, %444 : vector<8x128xf32>
    %447 = arith.addf %441, %446 : vector<8x128xf32>
    %c5_i32_129 = arith.constant 5 : i32
    %448 = arith.addi %419, %c5_i32_129 : i32
    %449 = arith.index_cast %448 : i32 to index
    %c0_130 = arith.constant 0 : index
    %450 = vector.load %arg5[%449, %c0_130] : memref<32x128xf32, #tpu.memory_space<vmem>>, vector<8x128xf32>
    %451 = vector.broadcast %18 : f32 to vector<8x128xf32>
    %452 = arith.mulf %451, %450 : vector<8x128xf32>
    %453 = arith.addf %447, %452 : vector<8x128xf32>
    %c6_i32_131 = arith.constant 6 : i32
    %454 = arith.addi %419, %c6_i32_131 : i32
    %455 = arith.index_cast %454 : i32 to index
    %c0_132 = arith.constant 0 : index
    %456 = vector.load %arg5[%455, %c0_132] : memref<32x128xf32, #tpu.memory_space<vmem>>, vector<8x128xf32>
    %457 = vector.broadcast %21 : f32 to vector<8x128xf32>
    %458 = arith.mulf %457, %456 : vector<8x128xf32>
    %459 = arith.addf %453, %458 : vector<8x128xf32>
    %c7_i32_133 = arith.constant 7 : i32
    %460 = arith.addi %419, %c7_i32_133 : i32
    %461 = arith.index_cast %460 : i32 to index
    %c0_134 = arith.constant 0 : index
    %462 = vector.load %arg5[%461, %c0_134] : memref<32x128xf32, #tpu.memory_space<vmem>>, vector<8x128xf32>
    %463 = vector.broadcast %24 : f32 to vector<8x128xf32>
    %464 = arith.mulf %463, %462 : vector<8x128xf32>
    %465 = arith.addf %459, %464 : vector<8x128xf32>
    %c8_i32_135 = arith.constant 8 : i32
    %466 = arith.addi %419, %c8_i32_135 : i32
    %467 = arith.index_cast %466 : i32 to index
    %c0_136 = arith.constant 0 : index
    %468 = vector.load %arg5[%467, %c0_136] : memref<32x128xf32, #tpu.memory_space<vmem>>, vector<8x128xf32>
    %469 = vector.broadcast %27 : f32 to vector<8x128xf32>
    %470 = arith.mulf %469, %468 : vector<8x128xf32>
    %471 = arith.addf %465, %470 : vector<8x128xf32>
    %c9_i32_137 = arith.constant 9 : i32
    %472 = arith.addi %419, %c9_i32_137 : i32
    %473 = arith.index_cast %472 : i32 to index
    %c0_138 = arith.constant 0 : index
    %474 = vector.load %arg5[%473, %c0_138] : memref<32x128xf32, #tpu.memory_space<vmem>>, vector<8x128xf32>
    %475 = vector.broadcast %30 : f32 to vector<8x128xf32>
    %476 = arith.mulf %475, %474 : vector<8x128xf32>
    %477 = arith.addf %471, %476 : vector<8x128xf32>
    %c10_i32_139 = arith.constant 10 : i32
    %478 = arith.addi %419, %c10_i32_139 : i32
    %479 = arith.index_cast %478 : i32 to index
    %c0_140 = arith.constant 0 : index
    %480 = vector.load %arg5[%479, %c0_140] : memref<32x128xf32, #tpu.memory_space<vmem>>, vector<8x128xf32>
    %481 = vector.broadcast %33 : f32 to vector<8x128xf32>
    %482 = arith.mulf %481, %480 : vector<8x128xf32>
    %483 = arith.addf %477, %482 : vector<8x128xf32>
    %c11_i32_141 = arith.constant 11 : i32
    %484 = arith.addi %419, %c11_i32_141 : i32
    %485 = arith.index_cast %484 : i32 to index
    %c0_142 = arith.constant 0 : index
    %486 = vector.load %arg5[%485, %c0_142] : memref<32x128xf32, #tpu.memory_space<vmem>>, vector<8x128xf32>
    %487 = vector.broadcast %36 : f32 to vector<8x128xf32>
    %488 = arith.mulf %487, %486 : vector<8x128xf32>
    %489 = arith.addf %483, %488 : vector<8x128xf32>
    %c12_i32_143 = arith.constant 12 : i32
    %490 = arith.addi %419, %c12_i32_143 : i32
    %491 = arith.index_cast %490 : i32 to index
    %c0_144 = arith.constant 0 : index
    %492 = vector.load %arg5[%491, %c0_144] : memref<32x128xf32, #tpu.memory_space<vmem>>, vector<8x128xf32>
    %493 = vector.broadcast %39 : f32 to vector<8x128xf32>
    %494 = arith.mulf %493, %492 : vector<8x128xf32>
    %495 = arith.addf %489, %494 : vector<8x128xf32>
    %c13_i32_145 = arith.constant 13 : i32
    %496 = arith.addi %419, %c13_i32_145 : i32
    %497 = arith.index_cast %496 : i32 to index
    %c0_146 = arith.constant 0 : index
    %498 = vector.load %arg5[%497, %c0_146] : memref<32x128xf32, #tpu.memory_space<vmem>>, vector<8x128xf32>
    %499 = vector.broadcast %42 : f32 to vector<8x128xf32>
    %500 = arith.mulf %499, %498 : vector<8x128xf32>
    %501 = arith.addf %495, %500 : vector<8x128xf32>
    %c14_i32_147 = arith.constant 14 : i32
    %502 = arith.addi %419, %c14_i32_147 : i32
    %503 = arith.index_cast %502 : i32 to index
    %c0_148 = arith.constant 0 : index
    %504 = vector.load %arg5[%503, %c0_148] : memref<32x128xf32, #tpu.memory_space<vmem>>, vector<8x128xf32>
    %505 = vector.broadcast %45 : f32 to vector<8x128xf32>
    %506 = arith.mulf %505, %504 : vector<8x128xf32>
    %507 = arith.addf %501, %506 : vector<8x128xf32>
    %c0_149 = arith.constant 0 : index
    %c0_150 = arith.constant 0 : index
    %508 = arith.index_cast %419 : i32 to index
    %c0_151 = arith.constant 0 : index
    %509 = vector.load %arg4[%c0_149, %c0_150, %508, %c0_151] : memref<1x1x16x128xf32, #tpu.memory_space<vmem>>, vector<1x1x8x128xf32>
    %510 = vector.shape_cast %509 : vector<1x1x8x128xf32> to vector<8x128xf32>
    %511 = vector.shape_cast %507 : vector<8x128xf32> to vector<1x1x8x128xf32>
    tpu.vector_store %arg4[%c0_149, %c0_150, %508, %c0_151], %511 {strides = array<i32>} : memref<1x1x16x128xf32, #tpu.memory_space<vmem>>, vector<1x1x8x128xf32>,
    %c1_i32_152 = arith.constant 1 : i32
    %c8_i32_153 = arith.constant 8 : i32
    %512 = arith.muli %c1_i32_152, %c8_i32_153 : i32
    %513 = tpu.assume_multiple %512, 8 : i32
    %514 = arith.index_cast %513 : i32 to index
    %c0_154 = arith.constant 0 : index
    %515 = vector.load %arg5[%514, %c0_154] : memref<32x128xf32, #tpu.memory_space<vmem>>, vector<8x128xf32>
    %516 = vector.broadcast %3 : f32 to vector<8x128xf32>
    %517 = arith.mulf %516, %515 : vector<8x128xf32>
    %c1_i32_155 = arith.constant 1 : i32
    %518 = arith.addi %513, %c1_i32_155 : i32
    %519 = arith.index_cast %518 : i32 to index
    %c0_156 = arith.constant 0 : index
    %520 = vector.load %arg5[%519, %c0_156] : memref<32x128xf32, #tpu.memory_space<vmem>>, vector<8x128xf32>
    %521 = vector.broadcast %6 : f32 to vector<8x128xf32>
    %522 = arith.mulf %521, %520 : vector<8x128xf32>
    %523 = arith.addf %517, %522 : vector<8x128xf32>
    %c2_i32_157 = arith.constant 2 : i32
    %524 = arith.addi %513, %c2_i32_157 : i32
    %525 = arith.index_cast %524 : i32 to index
    %c0_158 = arith.constant 0 : index
    %526 = vector.load %arg5[%525, %c0_158] : memref<32x128xf32, #tpu.memory_space<vmem>>, vector<8x128xf32>
    %527 = vector.broadcast %9 : f32 to vector<8x128xf32>
    %528 = arith.mulf %527, %526 : vector<8x128xf32>
    %529 = arith.addf %523, %528 : vector<8x128xf32>
    %c3_i32_159 = arith.constant 3 : i32
    %530 = arith.addi %513, %c3_i32_159 : i32
    %531 = arith.index_cast %530 : i32 to index
    %c0_160 = arith.constant 0 : index
    %532 = vector.load %arg5[%531, %c0_160] : memref<32x128xf32, #tpu.memory_space<vmem>>, vector<8x128xf32>
    %533 = vector.broadcast %12 : f32 to vector<8x128xf32>
    %534 = arith.mulf %533, %532 : vector<8x128xf32>
    %535 = arith.addf %529, %534 : vector<8x128xf32>
    %c4_i32_161 = arith.constant 4 : i32
    %536 = arith.addi %513, %c4_i32_161 : i32
    %537 = arith.index_cast %536 : i32 to index
    %c0_162 = arith.constant 0 : index
    %538 = vector.load %arg5[%537, %c0_162] : memref<32x128xf32, #tpu.memory_space<vmem>>, vector<8x128xf32>
    %539 = vector.broadcast %15 : f32 to vector<8x128xf32>
    %540 = arith.mulf %539, %538 : vector<8x128xf32>
    %541 = arith.addf %535, %540 : vector<8x128xf32>
    %c5_i32_163 = arith.constant 5 : i32
    %542 = arith.addi %513, %c5_i32_163 : i32
    %543 = arith.index_cast %542 : i32 to index
    %c0_164 = arith.constant 0 : index
    %544 = vector.load %arg5[%543, %c0_164] : memref<32x128xf32, #tpu.memory_space<vmem>>, vector<8x128xf32>
    %545 = vector.broadcast %18 : f32 to vector<8x128xf32>
    %546 = arith.mulf %545, %544 : vector<8x128xf32>
    %547 = arith.addf %541, %546 : vector<8x128xf32>
    %c6_i32_165 = arith.constant 6 : i32
    %548 = arith.addi %513, %c6_i32_165 : i32
    %549 = arith.index_cast %548 : i32 to index
    %c0_166 = arith.constant 0 : index
    %550 = vector.load %arg5[%549, %c0_166] : memref<32x128xf32, #tpu.memory_space<vmem>>, vector<8x128xf32>
    %551 = vector.broadcast %21 : f32 to vector<8x128xf32>
    %552 = arith.mulf %551, %550 : vector<8x128xf32>
    %553 = arith.addf %547, %552 : vector<8x128xf32>
    %c7_i32_167 = arith.constant 7 : i32
    %554 = arith.addi %513, %c7_i32_167 : i32
    %555 = arith.index_cast %554 : i32 to index
    %c0_168 = arith.constant 0 : index
    %556 = vector.load %arg5[%555, %c0_168] : memref<32x128xf32, #tpu.memory_space<vmem>>, vector<8x128xf32>
    %557 = vector.broadcast %24 : f32 to vector<8x128xf32>
    %558 = arith.mulf %557, %556 : vector<8x128xf32>
    %559 = arith.addf %553, %558 : vector<8x128xf32>
    %c8_i32_169 = arith.constant 8 : i32
    %560 = arith.addi %513, %c8_i32_169 : i32
    %561 = arith.index_cast %560 : i32 to index
    %c0_170 = arith.constant 0 : index
    %562 = vector.load %arg5[%561, %c0_170] : memref<32x128xf32, #tpu.memory_space<vmem>>, vector<8x128xf32>
    %563 = vector.broadcast %27 : f32 to vector<8x128xf32>
    %564 = arith.mulf %563, %562 : vector<8x128xf32>
    %565 = arith.addf %559, %564 : vector<8x128xf32>
    %c9_i32_171 = arith.constant 9 : i32
    %566 = arith.addi %513, %c9_i32_171 : i32
    %567 = arith.index_cast %566 : i32 to index
    %c0_172 = arith.constant 0 : index
    %568 = vector.load %arg5[%567, %c0_172] : memref<32x128xf32, #tpu.memory_space<vmem>>, vector<8x128xf32>
    %569 = vector.broadcast %30 : f32 to vector<8x128xf32>
    %570 = arith.mulf %569, %568 : vector<8x128xf32>
    %571 = arith.addf %565, %570 : vector<8x128xf32>
    %c10_i32_173 = arith.constant 10 : i32
    %572 = arith.addi %513, %c10_i32_173 : i32
    %573 = arith.index_cast %572 : i32 to index
    %c0_174 = arith.constant 0 : index
    %574 = vector.load %arg5[%573, %c0_174] : memref<32x128xf32, #tpu.memory_space<vmem>>, vector<8x128xf32>
    %575 = vector.broadcast %33 : f32 to vector<8x128xf32>
    %576 = arith.mulf %575, %574 : vector<8x128xf32>
    %577 = arith.addf %571, %576 : vector<8x128xf32>
    %c11_i32_175 = arith.constant 11 : i32
    %578 = arith.addi %513, %c11_i32_175 : i32
    %579 = arith.index_cast %578 : i32 to index
    %c0_176 = arith.constant 0 : index
    %580 = vector.load %arg5[%579, %c0_176] : memref<32x128xf32, #tpu.memory_space<vmem>>, vector<8x128xf32>
    %581 = vector.broadcast %36 : f32 to vector<8x128xf32>
    %582 = arith.mulf %581, %580 : vector<8x128xf32>
    %583 = arith.addf %577, %582 : vector<8x128xf32>
    %c12_i32_177 = arith.constant 12 : i32
    %584 = arith.addi %513, %c12_i32_177 : i32
    %585 = arith.index_cast %584 : i32 to index
    %c0_178 = arith.constant 0 : index
    %586 = vector.load %arg5[%585, %c0_178] : memref<32x128xf32, #tpu.memory_space<vmem>>, vector<8x128xf32>
    %587 = vector.broadcast %39 : f32 to vector<8x128xf32>
    %588 = arith.mulf %587, %586 : vector<8x128xf32>
    %589 = arith.addf %583, %588 : vector<8x128xf32>
    %c13_i32_179 = arith.constant 13 : i32
    %590 = arith.addi %513, %c13_i32_179 : i32
    %591 = arith.index_cast %590 : i32 to index
    %c0_180 = arith.constant 0 : index
    %592 = vector.load %arg5[%591, %c0_180] : memref<32x128xf32, #tpu.memory_space<vmem>>, vector<8x128xf32>
    %593 = vector.broadcast %42 : f32 to vector<8x128xf32>
    %594 = arith.mulf %593, %592 : vector<8x128xf32>
    %595 = arith.addf %589, %594 : vector<8x128xf32>
    %c14_i32_181 = arith.constant 14 : i32
    %596 = arith.addi %513, %c14_i32_181 : i32
    %597 = arith.index_cast %596 : i32 to index
    %c0_182 = arith.constant 0 : index
    %598 = vector.load %arg5[%597, %c0_182] : memref<32x128xf32, #tpu.memory_space<vmem>>, vector<8x128xf32>
    %599 = vector.broadcast %45 : f32 to vector<8x128xf32>
    %600 = arith.mulf %599, %598 : vector<8x128xf32>
    %601 = arith.addf %595, %600 : vector<8x128xf32>
    %c0_183 = arith.constant 0 : index
    %c0_184 = arith.constant 0 : index
    %602 = arith.index_cast %513 : i32 to index
    %c0_185 = arith.constant 0 : index
    %603 = vector.load %arg4[%c0_183, %c0_184, %602, %c0_185] : memref<1x1x16x128xf32, #tpu.memory_space<vmem>>, vector<1x1x8x128xf32>
    %604 = vector.shape_cast %603 : vector<1x1x8x128xf32> to vector<8x128xf32>
    %605 = vector.shape_cast %601 : vector<8x128xf32> to vector<1x1x8x128xf32>
    tpu.vector_store %arg4[%c0_183, %c0_184, %602, %c0_185], %605 {strides = array<i32>} : memref<1x1x16x128xf32, #tpu.memory_space<vmem>>, vector<1x1x8x128xf32>,
    %c2_i32_186 = arith.constant 2 : i32
    return
  }
  func.func @transform_0(%arg0: i32, %arg1: i32) -> i32 {
    %c0_i32 = arith.constant 0 : i32
    %c0_i32_0 = arith.constant 0 : i32
    return %c0_i32 : i32
  }
  func.func @transform_1(%arg0: i32, %arg1: i32) -> (i32, i32, i32) {
    %c0_i32 = arith.constant 0 : i32
    %c0_i32_0 = arith.constant 0 : i32
    %c0_i32_1 = arith.constant 0 : i32
    return %arg0, %c0_i32, %c0_i32_0 : i32, i32, i32
  }
  func.func @transform_2(%arg0: i32, %arg1: i32) -> (i32, i32, i32, i32) {
    %c0_i32 = arith.constant 0 : i32
    %c0_i32_0 = arith.constant 0 : i32
    %c0_i32_1 = arith.constant 0 : i32
    return %arg0, %arg1, %c0_i32, %c0_i32_0 : i32, i32, i32, i32
  }
}

</mosaic_0001>

<llo_original>
// kernel: tpu_custom_call.1
$region0: #{tpu_custom_call.1}
  #allocation0 [shape = 'u32[]', space=smem, size = 0x4, offset = 0x4, fixed_abs, tag = 'smem constant byte address 0x4 - core index']
  #allocation1 [shape = 'u32[144,128]{1,0:T(1,128)}', space=vmem, size = 0x12000, scoped, tag = 'internal scratch']
  #allocation2 [shape = 'f32[32,128]{1,0:T(8,128)}', space=vmem, size = 0x4000, scoped, tag = 'scratch operand']
  %s0 = inlined_call_operand.hbm [shape: f32[30], index: 0, kind: input, shape index: {}]
  %s1 = inlined_call_operand.hbm [shape: f32[2,32,256], index: 1, kind: input, shape index: {}]
  %s2 = inlined_call_operand.hbm [shape: f32[2,2,16,128], index: 2, kind: output, shape index: {}]
  %s3 = sld [smem:[#allocation0]]
  $region49: #{tpu_custom_call.1} parent=0
    _
  %s5 = ssub.s32 1, %s3
  %s6 = scalar_select 0, %s5, %s3
  $region1: #{tpu_custom_call.1} parent=0
    #allocation3 [shape = 'u8[512]{0}', space=smem, size = 0x200, scoped, tag = 'input window, operand 0, single buffered']
    #allocation4 [shape = 's32[2]{0}', space=sflag, size = 0x8, scoped, tag = 'scoped memory for tpu_custom_call.1']
    #allocation5 [shape = 's32[2]{0}', space=sflag, size = 0x8, scoped, tag = 'scoped memory for tpu_custom_call.1']
    #allocation6 [shape = 's32[2]{0}', space=sflag, size = 0x8, scoped, tag = 'scoped memory for tpu_custom_call.1']
    #allocation7 [shape = 'u8[65536]{0}', space=vmem, size = 0x10000, scoped, tag = 'input window, operand 1']
    #allocation8 [shape = 'u8[16384]{0}', space=vmem, size = 0x4000, scoped, tag = 'output window, operand 0']
    %7 = vsyncpa [#allocation6], 0
    %8 = vsyncpa [#allocation4], 0
    %s9 = scalar_lea.sflag [#allocation4], 1
    %10 = vsyncpa %s9, 0
    %11 = vsyncpa [#allocation5], 0
    %s12 = scalar_lea.sflag [#allocation5], 1
    %13 = vsyncpa %s12, 0
    loop: start=0, step=1, limit=6
    $region2: #{tpu_custom_call.1} parent=1 // loop_pre_header
      _
    $region3: #{tpu_custom_call.1} parent=1 // loop_header
      %s15 = sphi 0, %s19
      %p16 = scmp.ge.s32.totalorder %s15, 6
      %s22 = sphi 0, %s34
      %s23 = sphi 0, %s30
      %s24 = sphi 0, %s22
      %s25 = sphi 0, %s23
      %s26 = sphi 0, %s24
      %s27 = sphi 0, %s25
      %s35 = sphi 0, %s35
      %s37 = sphi 0, %s35
      %s38 = sphi 0, %s37
      %s52 = sphi 0, %s38
      %s58 = sphi 0, %s60
      %s61 = sphi 0, %s58
      %s62 = sphi 0, %s61
      %s78 = sphi 0, %s62
      %s86 = sphi 0, %s88
      %s89 = sphi 0, %s86
      %s90 = sphi 0, %s89
      %s106 = sphi 0, %s90
    $region4: #{tpu_custom_call.1} parent=1 // loop_header_branch
      %18 = sbr.rel (%p16) target = $region8
    $region5: #{tpu_custom_call.1} parent=1 // loop_body
      %s20 = ssub.s32 %s15, 1
      %s21 = ssub.s32 %s15, 2
      %s28 = sadd.s32 1, %s23
      %p29 = scmp.ge.s32.totalorder %s28, 2
      %s30 = scalar_select %p29, 0, %s28
      %s31 = sadd.s32 1, %s22
      %s32 = scalar_select %p29, %s31, %s22
      %p33 = scmp.ge.s32.totalorder %s32, 2
      %s34 = scalar_select %p33, 0, %s32
      %s36 = sadd.s32 %s35, 1
      %p39 = scmp.eq.s32.totalorder %s15, 3
      %p40 = scmp.ne.s32.totalorder %s35, %s37
      %p41 = scmp.eq.s32.totalorder %s15, 0
      %p42 = por %p40, %p41
      %p43 = scmp.ne.s32.totalorder %s35, %s37
      %p44 = scmp.eq.s32.totalorder %s20, 3
      %p45 = por %p43, %p44
      %p46 = scmp.ne.s32.totalorder %s37, %s38
      %p47 = scmp.eq.s32.totalorder %s20, 0
      %p48 = por %p46, %p47
      %p49 = scmp.ne.s32.totalorder %s37, %s38
      %p50 = scmp.eq.s32.totalorder %s21, 3
      %p51 = por %p49, %p50
      %p53 = scmp.ne.s32.totalorder %s38, %s52
      %p54 = scmp.eq.s32.totalorder %s21, 0
      %p55 = por %p53, %p54
      %s56 = ssub.s32 %s22, %s34
      %p57 = scmp.eq.s32.totalorder %s56, 0
      %s59 = sadd.s32 %s58, 1
      %s60 = scalar_select %p57, %s58, %s59
      %p63 = pneg %p57
      %p64 = scmp.eq.s32.totalorder %s15, 3
      %p65 = por %p63, %p64
      %p66 = scmp.ne.s32.totalorder %s58, %s61
      %p67 = scmp.eq.s32.totalorder %s15, 0
      %p68 = por %p66, %p67
      %p69 = scmp.ne.s32.totalorder %s58, %s61
      %p70 = scmp.eq.s32.totalorder %s20, 3
      %p71 = por %p69, %p70
      %p72 = scmp.ne.s32.totalorder %s61, %s62
      %p73 = scmp.eq.s32.totalorder %s20, 0
      %p74 = por %p72, %p73
      %p75 = scmp.ne.s32.totalorder %s61, %s62
      %p76 = scmp.eq.s32.totalorder %s21, 3
      %p77 = por %p75, %p76
      %p79 = scmp.ne.s32.totalorder %s62, %s78
      %p80 = scmp.eq.s32.totalorder %s21, 0
      %p81 = por %p79, %p80
      %s82 = ssub.s32 %s22, %s34
      %s83 = ssub.s32 %s23, %s30
      %s84 = sor.u32 %s82, %s83
      %p85 = scmp.eq.s32.totalorder %s84, 0
      %s87 = sadd.s32 %s86, 1
      %s88 = scalar_select %p85, %s86, %s87
      %p91 = pneg %p85
      %p92 = scmp.eq.s32.totalorder %s15, 3
      %p93 = por %p91, %p92
      %p94 = scmp.ne.s32.totalorder %s86, %s89
      %p95 = scmp.eq.s32.totalorder %s15, 0
      %p96 = por %p94, %p95
      %p97 = scmp.ne.s32.totalorder %s86, %s89
      %p98 = scmp.eq.s32.totalorder %s20, 3
      %p99 = por %p97, %p98
      %p100 = scmp.ne.s32.totalorder %s89, %s90
      %p101 = scmp.eq.s32.totalorder %s20, 0
      %p102 = por %p100, %p101
      %p103 = scmp.ne.s32.totalorder %s89, %s90
      %p104 = scmp.eq.s32.totalorder %s21, 3
      %p105 = por %p103, %p104
      %p107 = scmp.ne.s32.totalorder %s90, %s106
      %p108 = scmp.eq.s32.totalorder %s21, 0
      %p109 = por %p107, %p108
      %p110 = scmp.le.s32.totalorder 1, %s15
      %p111 = scmp.lt.s32.totalorder %s15, 5
      %p112 = pnand %p110, %p111
      %p113 = pneg %p112
      // Predicated region
      $region9: #{tpu_custom_call.1} parent=5 // pred_check
        _
      $region10: #{tpu_custom_call.1} parent=5 // pred_check_branch
        %115 = sbr.rel (%p112) target = $region12
      $region11: #{tpu_custom_call.1} parent=5 // pred_region
        %s116 = ssub.s32 %s15, 1
        // Predicated region
        $region13: #{tpu_custom_call.1} parent=11 // pred_check
          %p117 = pneg %p48
        $region14: #{tpu_custom_call.1} parent=11 // pred_check_branch
          %119 = sbr.rel (%p117) target = $region16
        $region15: #{tpu_custom_call.1} parent=11 // pred_region
          %s121 = ssub.s32 16, 16
          %122 = vsyncadd [#allocation6], %s121
          %125 = dma.hbm_to_smem %s0, 16, [#allocation3], [#allocation6]
        $region16: #{tpu_custom_call.1} parent=11 // pred_fallthru
          _
      $region12: #{tpu_custom_call.1} parent=5 // pred_fallthru
        _
      %p126 = scmp.lt.s32.totalorder %s15, 4
      // Predicated region
      $region17: #{tpu_custom_call.1} parent=5 // pred_check
        %p127 = pneg %p126
      $region18: #{tpu_custom_call.1} parent=5 // pred_check_branch
        %129 = sbr.rel (%p127) target = $region20
      $region19: #{tpu_custom_call.1} parent=5 // pred_region
        // Predicated region
        $region21: #{tpu_custom_call.1} parent=19 // pred_check
          %p130 = pneg %p68
        $region22: #{tpu_custom_call.1} parent=19 // pred_check_branch
          %132 = sbr.rel (%p130) target = $region24
        $region23: #{tpu_custom_call.1} parent=19 // pred_region
          %s133 = sand.u32 %s58, 1
          %s134 = scalar_lea.sflag [#allocation4], %s133
          %s135 = sand.u32 %s58, 1
          %s136 = smul.addr %s135, 64
          %s137 = scalar_lea.vmem [#allocation7], %s136
          %s139 = ssub.s32 1024, 1024
          %140 = vsyncadd %s134, %s139
          %s141 = smul.addr %s22, 8
          %s142 = smul.addr %s141, 128
          %s143 = scalar_lea.hbm %s1, %s142
          %s144 = sshll.u32 %s137, 4
          %s145 = int_to_ptr.vmem [resolvable:$true] %s144
          %150 = dma.hbm_to_vmem [thread:$0]  %s143, 1024, %s145, %s134, 256, 256, 16
        $region24: #{tpu_custom_call.1} parent=19 // pred_fallthru
          _
      $region20: #{tpu_custom_call.1} parent=5 // pred_fallthru
        _
      %p151 = scmp.le.s32.totalorder 1, %s15
      %p152 = scmp.lt.s32.totalorder %s15, 5
      %p153 = pnand %p151, %p152
      %p154 = pneg %p153
      // Predicated region
      $region25: #{tpu_custom_call.1} parent=5 // pred_check
        _
      $region26: #{tpu_custom_call.1} parent=5 // pred_check_branch
        %156 = sbr.rel (%p153) target = $region28
      $region27: #{tpu_custom_call.1} parent=5 // pred_region
        %s157 = ssub.s32 %s15, 1
        // Predicated region
        $region29: #{tpu_custom_call.1} parent=27 // pred_check
          %p158 = pneg %p48
        $region30: #{tpu_custom_call.1} parent=27 // pred_check_branch
          %160 = sbr.rel (%p158) target = $region32
        $region31: #{tpu_custom_call.1} parent=27 // pred_region
          %161 = dma.done [#allocation6], 16
        $region32: #{tpu_custom_call.1} parent=27 // pred_fallthru
          _
        %s162 = sand.u32 %s61, 1
        %s163 = scalar_lea.sflag [#allocation4], %s162
        %s164 = sand.u32 %s61, 1
        %s165 = smul.addr %s164, 64
        %s166 = scalar_lea.vmem [#allocation7], %s165
        // Predicated region
        $region33: #{tpu_custom_call.1} parent=27 // pred_check
          %p167 = pneg %p74
        $region34: #{tpu_custom_call.1} parent=27 // pred_check_branch
          %169 = sbr.rel (%p167) target = $region36
        $region35: #{tpu_custom_call.1} parent=27 // pred_region
          %170 = dma.done %s163, 1024
        $region36: #{tpu_custom_call.1} parent=27 // pred_fallthru
          _
        %171 = sfence
        %p172 = pneg %p48
        %p173 = pneg %p45
        %s174 = sand.u32 %s61, 1
        %s175 = scalar_lea.sflag [#allocation4], %s174
        %s176 = sand.u32 %s61, 1
        %s177 = smul.addr %s176, 64
        %s178 = scalar_lea.vmem [#allocation7], %s177
        %p179 = pneg %p74
        %p180 = pneg %p71
        %p181 = pneg %p102
        %p182 = pneg %p99
        %s183 = sand.u32 %s89, 1
        %s184 = scalar_lea.sflag [#allocation5], %s183
        %s185 = sand.u32 %s89, 1
        %s186 = smul.addr %s185, 16
        %s187 = scalar_lea.vmem [#allocation8], %s186
        %s188 = smul.u32 %s25, 15
        %s189 = sld [smem:[#allocation3 + %s188]]
        %s190 = sadd.s32 %s188, 1
        %s191 = sld [smem:[#allocation3 + %s190]]
        %s192 = sadd.s32 %s188, 2
        %s193 = sld [smem:[#allocation3 + %s192]]
        %s194 = sadd.s32 %s188, 3
        %s195 = sld [smem:[#allocation3 + %s194]]
        %s196 = sadd.s32 %s188, 4
        %s197 = sld [smem:[#allocation3 + %s196]]
        %s198 = sadd.s32 %s188, 5
        %s199 = sld [smem:[#allocation3 + %s198]]
        %s200 = sadd.s32 %s188, 6
        %s201 = sld [smem:[#allocation3 + %s200]]
        %s202 = sadd.s32 %s188, 7
        %s203 = sld [smem:[#allocation3 + %s202]]
        %s204 = sadd.s32 %s188, 8
        %s205 = sld [smem:[#allocation3 + %s204]]
        %s206 = sadd.s32 %s188, 9
        %s207 = sld [smem:[#allocation3 + %s206]]
        %s208 = sadd.s32 %s188, 10
        %s209 = sld [smem:[#allocation3 + %s208]]
        %s210 = sadd.s32 %s188, 11
        %s211 = sld [smem:[#allocation3 + %s210]]
        %s212 = sadd.s32 %s188, 12
        %s213 = sld [smem:[#allocation3 + %s212]]
        %s214 = sadd.s32 %s188, 13
        %s215 = sld [smem:[#allocation3 + %s214]]
        %s216 = sadd.s32 %s188, 14
        %s217 = sld [smem:[#allocation3 + %s216]]
        %s218 = smul.u32 0, 2
        %s219 = smul.addr %s218, 8
        %s220 = scalar_lea.vmem %s166, %s219 [#allocation7]
        %v221 = vld [vmem:[%s220] sm:$0xff]
        %v222 = vstv %s189
        %v223 = vmul.f32 %v222, %v221
        %v224 = vld [vmem:[%s220 + $0x8] sm:$0xff]
        %v225 = vstv %s191
        %v226 = vmul.f32 %v225, %v221
        %v227 = vmul.f32 %v225, %v224
        %230 = vrot.lane.b32.xlu0 %v226, 127
        %v231 = vpop.permute.xlu0 %230
        %232 = vrot.lane.b32.xlu0 %v227, 127
        %v233 = vpop.permute.xlu0 %232
        %vm234 = vcmask 1039360
        %v235 = vsel %vm234, %v231, %v233
        %v237 = vadd.f32 %v223, %v235
        %v238 = vstv %s193
        %v239 = vmul.f32 %v238, %v221
        %v240 = vmul.f32 %v238, %v224
        %243 = vrot.lane.b32.xlu0 %v239, 126
        %v244 = vpop.permute.xlu0 %243
        %245 = vrot.lane.b32.xlu0 %v240, 126
        %v246 = vpop.permute.xlu0 %245
        %vm247 = vcmask 1031168
        %v248 = vsel %vm247, %v244, %v246
        %v250 = vadd.f32 %v237, %v248
        %v251 = vstv %s195
        %v252 = vmul.f32 %v251, %v221
        %v253 = vmul.f32 %v251, %v224
        %256 = vrot.lane.b32.xlu0 %v252, 125
        %v257 = vpop.permute.xlu0 %256
        %258 = vrot.lane.b32.xlu0 %v253, 125
        %v259 = vpop.permute.xlu0 %258
        %vm260 = vcmask 1022976
        %v261 = vsel %vm260, %v257, %v259
        %v263 = vadd.f32 %v250, %v261
        %v264 = vstv %s197
        %v265 = vmul.f32 %v264, %v221
        %v266 = vmul.f32 %v264, %v224
        %269 = vrot.lane.b32.xlu0 %v265, 124
        %v270 = vpop.permute.xlu0 %269
        %271 = vrot.lane.b32.xlu0 %v266, 124
        %v272 = vpop.permute.xlu0 %271
        %vm273 = vcmask 1014784
        %v274 = vsel %vm273, %v270, %v272
        %v276 = vadd.f32 %v263, %v274
        %v277 = vstv %s199
        %v278 = vmul.f32 %v277, %v221
        %v279 = vmul.f32 %v277, %v224
        %282 = vrot.lane.b32.xlu0 %v278, 123
        %v283 = vpop.permute.xlu0 %282
        %284 = vrot.lane.b32.xlu0 %v279, 123
        %v285 = vpop.permute.xlu0 %284
        %vm286 = vcmask 1006592
        %v287 = vsel %vm286, %v283, %v285
        %v289 = vadd.f32 %v276, %v287
        %v290 = vstv %s201
        %v291 = vmul.f32 %v290, %v221
        %v292 = vmul.f32 %v290, %v224
        %295 = vrot.lane.b32.xlu0 %v291, 122
        %v296 = vpop.permute.xlu0 %295
        %297 = vrot.lane.b32.xlu0 %v292, 122
        %v298 = vpop.permute.xlu0 %297
        %vm299 = vcmask 998400
        %v300 = vsel %vm299, %v296, %v298
        %v302 = vadd.f32 %v289, %v300
        %v303 = vstv %s203
        %v304 = vmul.f32 %v303, %v221
        %v305 = vmul.f32 %v303, %v224
        %308 = vrot.lane.b32.xlu0 %v304, 121
        %v309 = vpop.permute.xlu0 %308
        %310 = vrot.lane.b32.xlu0 %v305, 121
        %v311 = vpop.permute.xlu0 %310
        %vm312 = vcmask 990208
        %v313 = vsel %vm312, %v309, %v311
        %v315 = vadd.f32 %v302, %v313
        %v316 = vstv %s205
        %v317 = vmul.f32 %v316, %v221
        %v318 = vmul.f32 %v316, %v224
        %321 = vrot.lane.b32.xlu0 %v317, 120
        %v322 = vpop.permute.xlu0 %321
        %323 = vrot.lane.b32.xlu0 %v318, 120
        %v324 = vpop.permute.xlu0 %323
        %vm325 = vcmask 982016
        %v326 = vsel %vm325, %v322, %v324
        %v328 = vadd.f32 %v315, %v326
        %v329 = vstv %s207
        %v330 = vmul.f32 %v329, %v221
        %v331 = vmul.f32 %v329, %v224
        %334 = vrot.lane.b32.xlu0 %v330, 119
        %v335 = vpop.permute.xlu0 %334
        %336 = vrot.lane.b32.xlu0 %v331, 119
        %v337 = vpop.permute.xlu0 %336
        %vm338 = vcmask 973824
        %v339 = vsel %vm338, %v335, %v337
        %v341 = vadd.f32 %v328, %v339
        %v342 = vstv %s209
        %v343 = vmul.f32 %v342, %v221
        %v344 = vmul.f32 %v342, %v224
        %347 = vrot.lane.b32.xlu0 %v343, 118
        %v348 = vpop.permute.xlu0 %347
        %349 = vrot.lane.b32.xlu0 %v344, 118
        %v350 = vpop.permute.xlu0 %349
        %vm351 = vcmask 965632
        %v352 = vsel %vm351, %v348, %v350
        %v354 = vadd.f32 %v341, %v352
        %v355 = vstv %s211
        %v356 = vmul.f32 %v355, %v221
        %v357 = vmul.f32 %v355, %v224
        %360 = vrot.lane.b32.xlu0 %v356, 117
        %v361 = vpop.permute.xlu0 %360
        %362 = vrot.lane.b32.xlu0 %v357, 117
        %v363 = vpop.permute.xlu0 %362
        %vm364 = vcmask 957440
        %v365 = vsel %vm364, %v361, %v363
        %v367 = vadd.f32 %v354, %v365
        %v368 = vstv %s213
        %v369 = vmul.f32 %v368, %v221
        %v370 = vmul.f32 %v368, %v224
        %373 = vrot.lane.b32.xlu0 %v369, 116
        %v374 = vpop.permute.xlu0 %373
        %375 = vrot.lane.b32.xlu0 %v370, 116
        %v376 = vpop.permute.xlu0 %375
        %vm377 = vcmask 949248
        %v378 = vsel %vm377, %v374, %v376
        %v380 = vadd.f32 %v367, %v378
        %v381 = vstv %s215
        %v382 = vmul.f32 %v381, %v221
        %v383 = vmul.f32 %v381, %v224
        %386 = vrot.lane.b32.xlu0 %v382, 115
        %v387 = vpop.permute.xlu0 %386
        %388 = vrot.lane.b32.xlu0 %v383, 115
        %v389 = vpop.permute.xlu0 %388
        %vm390 = vcmask 941056
        %v391 = vsel %vm390, %v387, %v389
        %v393 = vadd.f32 %v380, %v391
        %v394 = vstv %s217
        %v395 = vmul.f32 %v394, %v221
        %v396 = vmul.f32 %v394, %v224
        %399 = vrot.lane.b32.xlu0 %v395, 114
        %v400 = vpop.permute.xlu0 %399
        %401 = vrot.lane.b32.xlu0 %v396, 114
        %v402 = vpop.permute.xlu0 %401
        %vm403 = vcmask 932864
        %v404 = vsel %vm403, %v400, %v402
        %v406 = vadd.f32 %v393, %v404
        %407 = vst [vmem:[#allocation2] sm:$0xff] %v406
        %s408 = smul.u32 1, 2
        %s409 = smul.addr %s408, 8
        %s410 = scalar_lea.vmem %s166, %s409 [#allocation7]
        %v411 = vld [vmem:[%s410] sm:$0xff]
        %v412 = vmul.f32 %v222, %v411
        %v413 = vld [vmem:[%s410 + $0x8] sm:$0xff]
        %v414 = vmul.f32 %v225, %v411
        %v415 = vmul.f32 %v225, %v413
        %418 = vrot.lane.b32.xlu0 %v414, 127
        %v419 = vpop.permute.xlu0 %418
        %420 = vrot.lane.b32.xlu0 %v415, 127
        %v421 = vpop.permute.xlu0 %420
        %v422 = vsel %vm234, %v419, %v421
        %v424 = vadd.f32 %v412, %v422
        %v425 = vmul.f32 %v238, %v411
        %v426 = vmul.f32 %v238, %v413
        %429 = vrot.lane.b32.xlu0 %v425, 126
        %v430 = vpop.permute.xlu0 %429
        %431 = vrot.lane.b32.xlu0 %v426, 126
        %v432 = vpop.permute.xlu0 %431
        %v433 = vsel %vm247, %v430, %v432
        %v435 = vadd.f32 %v424, %v433
        %v436 = vmul.f32 %v251, %v411
        %v437 = vmul.f32 %v251, %v413
        %440 = vrot.lane.b32.xlu0 %v436, 125
        %v441 = vpop.permute.xlu0 %440
        %442 = vrot.lane.b32.xlu0 %v437, 125
        %v443 = vpop.permute.xlu0 %442
        %v444 = vsel %vm260, %v441, %v443
        %v446 = vadd.f32 %v435, %v444
        %v447 = vmul.f32 %v264, %v411
        %v448 = vmul.f32 %v264, %v413
        %451 = vrot.lane.b32.xlu0 %v447, 124
        %v452 = vpop.permute.xlu0 %451
        %453 = vrot.lane.b32.xlu0 %v448, 124
        %v454 = vpop.permute.xlu0 %453
        %v455 = vsel %vm273, %v452, %v454
        %v457 = vadd.f32 %v446, %v455
        %v458 = vmul.f32 %v277, %v411
        %v459 = vmul.f32 %v277, %v413
        %462 = vrot.lane.b32.xlu0 %v458, 123
        %v463 = vpop.permute.xlu0 %462
        %464 = vrot.lane.b32.xlu0 %v459, 123
        %v465 = vpop.permute.xlu0 %464
        %v466 = vsel %vm286, %v463, %v465
        %v468 = vadd.f32 %v457, %v466
        %v469 = vmul.f32 %v290, %v411
        %v470 = vmul.f32 %v290, %v413
        %473 = vrot.lane.b32.xlu0 %v469, 122
        %v474 = vpop.permute.xlu0 %473
        %475 = vrot.lane.b32.xlu0 %v470, 122
        %v476 = vpop.permute.xlu0 %475
        %v477 = vsel %vm299, %v474, %v476
        %v479 = vadd.f32 %v468, %v477
        %v480 = vmul.f32 %v303, %v411
        %v481 = vmul.f32 %v303, %v413
        %484 = vrot.lane.b32.xlu0 %v480, 121
        %v485 = vpop.permute.xlu0 %484
        %486 = vrot.lane.b32.xlu0 %v481, 121
        %v487 = vpop.permute.xlu0 %486
        %v488 = vsel %vm312, %v485, %v487
        %v490 = vadd.f32 %v479, %v488
        %v491 = vmul.f32 %v316, %v411
        %v492 = vmul.f32 %v316, %v413
        %495 = vrot.lane.b32.xlu0 %v491, 120
        %v496 = vpop.permute.xlu0 %495
        %497 = vrot.lane.b32.xlu0 %v492, 120
        %v498 = vpop.permute.xlu0 %497
        %v499 = vsel %vm325, %v496, %v498
        %v501 = vadd.f32 %v490, %v499
        %v502 = vmul.f32 %v329, %v411
        %v503 = vmul.f32 %v329, %v413
        %506 = vrot.lane.b32.xlu0 %v502, 119
        %v507 = vpop.permute.xlu0 %506
        %508 = vrot.lane.b32.xlu0 %v503, 119
        %v509 = vpop.permute.xlu0 %508
        %v510 = vsel %vm338, %v507, %v509
        %v512 = vadd.f32 %v501, %v510
        %v513 = vmul.f32 %v342, %v411
        %v514 = vmul.f32 %v342, %v413
        %517 = vrot.lane.b32.xlu0 %v513, 118
        %v518 = vpop.permute.xlu0 %517
        %519 = vrot.lane.b32.xlu0 %v514, 118
        %v520 = vpop.permute.xlu0 %519
        %v521 = vsel %vm351, %v518, %v520
        %v523 = vadd.f32 %v512, %v521
        %v524 = vmul.f32 %v355, %v411
        %v525 = vmul.f32 %v355, %v413
        %528 = vrot.lane.b32.xlu0 %v524, 117
        %v529 = vpop.permute.xlu0 %528
        %530 = vrot.lane.b32.xlu0 %v525, 117
        %v531 = vpop.permute.xlu0 %530
        %v532 = vsel %vm364, %v529, %v531
        %v534 = vadd.f32 %v523, %v532
        %v535 = vmul.f32 %v368, %v411
        %v536 = vmul.f32 %v368, %v413
        %539 = vrot.lane.b32.xlu0 %v535, 116
        %v540 = vpop.permute.xlu0 %539
        %541 = vrot.lane.b32.xlu0 %v536, 116
        %v542 = vpop.permute.xlu0 %541
        %v543 = vsel %vm377, %v540, %v542
        %v545 = vadd.f32 %v534, %v543
        %v546 = vmul.f32 %v381, %v411
        %v547 = vmul.f32 %v381, %v413
        %550 = vrot.lane.b32.xlu0 %v546, 115
        %v551 = vpop.permute.xlu0 %550
        %552 = vrot.lane.b32.xlu0 %v547, 115
        %v553 = vpop.permute.xlu0 %552
        %v554 = vsel %vm390, %v551, %v553
        %v556 = vadd.f32 %v545, %v554
        %v557 = vmul.f32 %v394, %v411
        %v558 = vmul.f32 %v394, %v413
        %561 = vrot.lane.b32.xlu0 %v557, 114
        %v562 = vpop.permute.xlu0 %561
        %563 = vrot.lane.b32.xlu0 %v558, 114
        %v564 = vpop.permute.xlu0 %563
        %v565 = vsel %vm403, %v562, %v564
        %v567 = vadd.f32 %v556, %v565
        %s568 = scalar_lea.vmem [#allocation2], 8
        %569 = vst [vmem:[%s568] sm:$0xff] %v567
        %s570 = smul.u32 2, 2
        %s571 = smul.addr %s570, 8
        %s572 = scalar_lea.vmem %s166, %s571 [#allocation7]
        %v573 = vld [vmem:[%s572] sm:$0xff]
        %v574 = vmul.f32 %v222, %v573
        %v575 = vld [vmem:[%s572 + $0x8] sm:$0xff]
        %v576 = vmul.f32 %v225, %v573
        %v577 = vmul.f32 %v225, %v575
        %580 = vrot.lane.b32.xlu0 %v576, 127
        %v581 = vpop.permute.xlu0 %580
        %582 = vrot.lane.b32.xlu0 %v577, 127
        %v583 = vpop.permute.xlu0 %582
        %v584 = vsel %vm234, %v581, %v583
        %v586 = vadd.f32 %v574, %v584
        %v587 = vmul.f32 %v238, %v573
        %v588 = vmul.f32 %v238, %v575
        %591 = vrot.lane.b32.xlu0 %v587, 126
        %v592 = vpop.permute.xlu0 %591
        %593 = vrot.lane.b32.xlu0 %v588, 126
        %v594 = vpop.permute.xlu0 %593
        %v595 = vsel %vm247, %v592, %v594
        %v597 = vadd.f32 %v586, %v595
        %v598 = vmul.f32 %v251, %v573
        %v599 = vmul.f32 %v251, %v575
        %602 = vrot.lane.b32.xlu0 %v598, 125
        %v603 = vpop.permute.xlu0 %602
        %604 = vrot.lane.b32.xlu0 %v599, 125
        %v605 = vpop.permute.xlu0 %604
        %v606 = vsel %vm260, %v603, %v605
        %v608 = vadd.f32 %v597, %v606
        %v609 = vmul.f32 %v264, %v573
        %v610 = vmul.f32 %v264, %v575
        %613 = vrot.lane.b32.xlu0 %v609, 124
        %v614 = vpop.permute.xlu0 %613
        %615 = vrot.lane.b32.xlu0 %v610, 124
        %v616 = vpop.permute.xlu0 %615
        %v617 = vsel %vm273, %v614, %v616
        %v619 = vadd.f32 %v608, %v617
        %v620 = vmul.f32 %v277, %v573
        %v621 = vmul.f32 %v277, %v575
        %624 = vrot.lane.b32.xlu0 %v620, 123
        %v625 = vpop.permute.xlu0 %624
        %626 = vrot.lane.b32.xlu0 %v621, 123
        %v627 = vpop.permute.xlu0 %626
        %v628 = vsel %vm286, %v625, %v627
        %v630 = vadd.f32 %v619, %v628
        %v631 = vmul.f32 %v290, %v573
        %v632 = vmul.f32 %v290, %v575
        %635 = vrot.lane.b32.xlu0 %v631, 122
        %v636 = vpop.permute.xlu0 %635
        %637 = vrot.lane.b32.xlu0 %v632, 122
        %v638 = vpop.permute.xlu0 %637
        %v639 = vsel %vm299, %v636, %v638
        %v641 = vadd.f32 %v630, %v639
        %v642 = vmul.f32 %v303, %v573
        %v643 = vmul.f32 %v303, %v575
        %646 = vrot.lane.b32.xlu0 %v642, 121
        %v647 = vpop.permute.xlu0 %646
        %648 = vrot.lane.b32.xlu0 %v643, 121
        %v649 = vpop.permute.xlu0 %648
        %v650 = vsel %vm312, %v647, %v649
        %v652 = vadd.f32 %v641, %v650
        %v653 = vmul.f32 %v316, %v573
        %v654 = vmul.f32 %v316, %v575
        %657 = vrot.lane.b32.xlu0 %v653, 120
        %v658 = vpop.permute.xlu0 %657
        %659 = vrot.lane.b32.xlu0 %v654, 120
        %v660 = vpop.permute.xlu0 %659
        %v661 = vsel %vm325, %v658, %v660
        %v663 = vadd.f32 %v652, %v661
        %v664 = vmul.f32 %v329, %v573
        %v665 = vmul.f32 %v329, %v575
        %668 = vrot.lane.b32.xlu0 %v664, 119
        %v669 = vpop.permute.xlu0 %668
        %670 = vrot.lane.b32.xlu0 %v665, 119
        %v671 = vpop.permute.xlu0 %670
        %v672 = vsel %vm338, %v669, %v671
        %v674 = vadd.f32 %v663, %v672
        %v675 = vmul.f32 %v342, %v573
        %v676 = vmul.f32 %v342, %v575
        %679 = vrot.lane.b32.xlu0 %v675, 118
        %v680 = vpop.permute.xlu0 %679
        %681 = vrot.lane.b32.xlu0 %v676, 118
        %v682 = vpop.permute.xlu0 %681
        %v683 = vsel %vm351, %v680, %v682
        %v685 = vadd.f32 %v674, %v683
        %v686 = vmul.f32 %v355, %v573
        %v687 = vmul.f32 %v355, %v575
        %690 = vrot.lane.b32.xlu0 %v686, 117
        %v691 = vpop.permute.xlu0 %690
        %692 = vrot.lane.b32.xlu0 %v687, 117
        %v693 = vpop.permute.xlu0 %692
        %v694 = vsel %vm364, %v691, %v693
        %v696 = vadd.f32 %v685, %v694
        %v697 = vmul.f32 %v368, %v573
        %v698 = vmul.f32 %v368, %v575
        %701 = vrot.lane.b32.xlu0 %v697, 116
        %v702 = vpop.permute.xlu0 %701
        %703 = vrot.lane.b32.xlu0 %v698, 116
        %v704 = vpop.permute.xlu0 %703
        %v705 = vsel %vm377, %v702, %v704
        %v707 = vadd.f32 %v696, %v705
        %v708 = vmul.f32 %v381, %v573
        %v709 = vmul.f32 %v381, %v575
        %712 = vrot.lane.b32.xlu0 %v708, 115
        %v713 = vpop.permute.xlu0 %712
        %714 = vrot.lane.b32.xlu0 %v709, 115
        %v715 = vpop.permute.xlu0 %714
        %v716 = vsel %vm390, %v713, %v715
        %v718 = vadd.f32 %v707, %v716
        %v719 = vmul.f32 %v394, %v573
        %v720 = vmul.f32 %v394, %v575
        %723 = vrot.lane.b32.xlu0 %v719, 114
        %v724 = vpop.permute.xlu0 %723
        %725 = vrot.lane.b32.xlu0 %v720, 114
        %v726 = vpop.permute.xlu0 %725
        %v727 = vsel %vm403, %v724, %v726
        %v729 = vadd.f32 %v718, %v727
        %s730 = scalar_lea.vmem [#allocation2], 16
        %731 = vst [vmem:[%s730] sm:$0xff] %v729
        %s732 = smul.u32 3, 2
        %s733 = smul.addr %s732, 8
        %s734 = scalar_lea.vmem %s166, %s733 [#allocation7]
        %v735 = vld [vmem:[%s734] sm:$0xff]
        %v736 = vmul.f32 %v222, %v735
        %v737 = vld [vmem:[%s734 + $0x8] sm:$0xff]
        %v738 = vmul.f32 %v225, %v735
        %v739 = vmul.f32 %v225, %v737
        %742 = vrot.lane.b32.xlu0 %v738, 127
        %v743 = vpop.permute.xlu0 %742
        %744 = vrot.lane.b32.xlu0 %v739, 127
        %v745 = vpop.permute.xlu0 %744
        %v746 = vsel %vm234, %v743, %v745
        %v748 = vadd.f32 %v736, %v746
        %v749 = vmul.f32 %v238, %v735
        %v750 = vmul.f32 %v238, %v737
        %753 = vrot.lane.b32.xlu0 %v749, 126
        %v754 = vpop.permute.xlu0 %753
        %755 = vrot.lane.b32.xlu0 %v750, 126
        %v756 = vpop.permute.xlu0 %755
        %v757 = vsel %vm247, %v754, %v756
        %v759 = vadd.f32 %v748, %v757
        %v760 = vmul.f32 %v251, %v735
        %v761 = vmul.f32 %v251, %v737
        %764 = vrot.lane.b32.xlu0 %v760, 125
        %v765 = vpop.permute.xlu0 %764
        %766 = vrot.lane.b32.xlu0 %v761, 125
        %v767 = vpop.permute.xlu0 %766
        %v768 = vsel %vm260, %v765, %v767
        %v770 = vadd.f32 %v759, %v768
        %v771 = vmul.f32 %v264, %v735
        %v772 = vmul.f32 %v264, %v737
        %775 = vrot.lane.b32.xlu0 %v771, 124
        %v776 = vpop.permute.xlu0 %775
        %777 = vrot.lane.b32.xlu0 %v772, 124
        %v778 = vpop.permute.xlu0 %777
        %v779 = vsel %vm273, %v776, %v778
        %v781 = vadd.f32 %v770, %v779
        %v782 = vmul.f32 %v277, %v735
        %v783 = vmul.f32 %v277, %v737
        %786 = vrot.lane.b32.xlu0 %v782, 123
        %v787 = vpop.permute.xlu0 %786
        %788 = vrot.lane.b32.xlu0 %v783, 123
        %v789 = vpop.permute.xlu0 %788
        %v790 = vsel %vm286, %v787, %v789
        %v792 = vadd.f32 %v781, %v790
        %v793 = vmul.f32 %v290, %v735
        %v794 = vmul.f32 %v290, %v737
        %797 = vrot.lane.b32.xlu0 %v793, 122
        %v798 = vpop.permute.xlu0 %797
        %799 = vrot.lane.b32.xlu0 %v794, 122
        %v800 = vpop.permute.xlu0 %799
        %v801 = vsel %vm299, %v798, %v800
        %v803 = vadd.f32 %v792, %v801
        %v804 = vmul.f32 %v303, %v735
        %v805 = vmul.f32 %v303, %v737
        %808 = vrot.lane.b32.xlu0 %v804, 121
        %v809 = vpop.permute.xlu0 %808
        %810 = vrot.lane.b32.xlu0 %v805, 121
        %v811 = vpop.permute.xlu0 %810
        %v812 = vsel %vm312, %v809, %v811
        %v814 = vadd.f32 %v803, %v812
        %v815 = vmul.f32 %v316, %v735
        %v816 = vmul.f32 %v316, %v737
        %819 = vrot.lane.b32.xlu0 %v815, 120
        %v820 = vpop.permute.xlu0 %819
        %821 = vrot.lane.b32.xlu0 %v816, 120
        %v822 = vpop.permute.xlu0 %821
        %v823 = vsel %vm325, %v820, %v822
        %v825 = vadd.f32 %v814, %v823
        %v826 = vmul.f32 %v329, %v735
        %v827 = vmul.f32 %v329, %v737
        %830 = vrot.lane.b32.xlu0 %v826, 119
        %v831 = vpop.permute.xlu0 %830
        %832 = vrot.lane.b32.xlu0 %v827, 119
        %v833 = vpop.permute.xlu0 %832
        %v834 = vsel %vm338, %v831, %v833
        %v836 = vadd.f32 %v825, %v834
        %v837 = vmul.f32 %v342, %v735
        %v838 = vmul.f32 %v342, %v737
        %841 = vrot.lane.b32.xlu0 %v837, 118
        %v842 = vpop.permute.xlu0 %841
        %843 = vrot.lane.b32.xlu0 %v838, 118
        %v844 = vpop.permute.xlu0 %843
        %v845 = vsel %vm351, %v842, %v844
        %v847 = vadd.f32 %v836, %v845
        %v848 = vmul.f32 %v355, %v735
        %v849 = vmul.f32 %v355, %v737
        %852 = vrot.lane.b32.xlu0 %v848, 117
        %v853 = vpop.permute.xlu0 %852
        %854 = vrot.lane.b32.xlu0 %v849, 117
        %v855 = vpop.permute.xlu0 %854
        %v856 = vsel %vm364, %v853, %v855
        %v858 = vadd.f32 %v847, %v856
        %v859 = vmul.f32 %v368, %v735
        %v860 = vmul.f32 %v368, %v737
        %863 = vrot.lane.b32.xlu0 %v859, 116
        %v864 = vpop.permute.xlu0 %863
        %865 = vrot.lane.b32.xlu0 %v860, 116
        %v866 = vpop.permute.xlu0 %865
        %v867 = vsel %vm377, %v864, %v866
        %v869 = vadd.f32 %v858, %v867
        %v870 = vmul.f32 %v381, %v735
        %v871 = vmul.f32 %v381, %v737
        %874 = vrot.lane.b32.xlu0 %v870, 115
        %v875 = vpop.permute.xlu0 %874
        %876 = vrot.lane.b32.xlu0 %v871, 115
        %v877 = vpop.permute.xlu0 %876
        %v878 = vsel %vm390, %v875, %v877
        %v880 = vadd.f32 %v869, %v878
        %v881 = vmul.f32 %v394, %v735
        %v882 = vmul.f32 %v394, %v737
        %885 = vrot.lane.b32.xlu0 %v881, 114
        %v886 = vpop.permute.xlu0 %885
        %887 = vrot.lane.b32.xlu0 %v882, 114
        %v888 = vpop.permute.xlu0 %887
        %v889 = vsel %vm403, %v886, %v888
        %v891 = vadd.f32 %v880, %v889
        %s892 = scalar_lea.vmem [#allocation2], 24
        %893 = vst [vmem:[%s892] sm:$0xff] %v891
        %v894 = vld [vmem:[#allocation2] sm:$0xff]
        %v895 = vmul.f32 %v222, %v894
        %s896 = sadd.s32 0, 1
        %s897 = scalar_lea.vmem [#allocation2], %s896
        %v898 = vld [vmem:[%s897] sm:$0xff]
        %v899 = vmul.f32 %v225, %v898
        %v900 = vadd.f32 %v895, %v899
        %s901 = sadd.s32 0, 2
        %s902 = scalar_lea.vmem [#allocation2], %s901
        %v903 = vld [vmem:[%s902] sm:$0xff]
        %v904 = vmul.f32 %v238, %v903
        %v905 = vadd.f32 %v900, %v904
        %s906 = sadd.s32 0, 3
        %s907 = scalar_lea.vmem [#allocation2], %s906
        %v908 = vld [vmem:[%s907] sm:$0xff]
        %v909 = vmul.f32 %v251, %v908
        %v910 = vadd.f32 %v905, %v909
        %s911 = sadd.s32 0, 4
        %s912 = scalar_lea.vmem [#allocation2], %s911
        %v913 = vld [vmem:[%s912] sm:$0xff]
        %v914 = vmul.f32 %v264, %v913
        %v915 = vadd.f32 %v910, %v914
        %s916 = sadd.s32 0, 5
        %s917 = scalar_lea.vmem [#allocation2], %s916
        %v918 = vld [vmem:[%s917] sm:$0xff]
        %v919 = vmul.f32 %v277, %v918
        %v920 = vadd.f32 %v915, %v919
        %s921 = sadd.s32 0, 6
        %s922 = scalar_lea.vmem [#allocation2], %s921
        %v923 = vld [vmem:[%s922] sm:$0xff]
        %v924 = vmul.f32 %v290, %v923
        %v925 = vadd.f32 %v920, %v924
        %s926 = sadd.s32 0, 7
        %s927 = scalar_lea.vmem [#allocation2], %s926
        %v928 = vld [vmem:[%s927] sm:$0xff]
        %v929 = vmul.f32 %v303, %v928
        %v930 = vadd.f32 %v925, %v929
        %s931 = sadd.s32 0, 8
        %s932 = scalar_lea.vmem [#allocation2], %s931
        %v933 = vld [vmem:[%s932] sm:$0xff]
        %v934 = vmul.f32 %v316, %v933
        %v935 = vadd.f32 %v930, %v934
        %s936 = sadd.s32 0, 9
        %s937 = scalar_lea.vmem [#allocation2], %s936
        %v938 = vld [vmem:[%s937] sm:$0xff]
        %v939 = vmul.f32 %v329, %v938
        %v940 = vadd.f32 %v935, %v939
        %s941 = sadd.s32 0, 10
        %s942 = scalar_lea.vmem [#allocation2], %s941
        %v943 = vld [vmem:[%s942] sm:$0xff]
        %v944 = vmul.f32 %v342, %v943
        %v945 = vadd.f32 %v940, %v944
        %s946 = sadd.s32 0, 11
        %s947 = scalar_lea.vmem [#allocation2], %s946
        %v948 = vld [vmem:[%s947] sm:$0xff]
        %v949 = vmul.f32 %v355, %v948
        %v950 = vadd.f32 %v945, %v949
        %s951 = sadd.s32 0, 12
        %s952 = scalar_lea.vmem [#allocation2], %s951
        %v953 = vld [vmem:[%s952] sm:$0xff]
        %v954 = vmul.f32 %v368, %v953
        %v955 = vadd.f32 %v950, %v954
        %s956 = sadd.s32 0, 13
        %s957 = scalar_lea.vmem [#allocation2], %s956
        %v958 = vld [vmem:[%s957] sm:$0xff]
        %v959 = vmul.f32 %v381, %v958
        %v960 = vadd.f32 %v955, %v959
        %s961 = sadd.s32 0, 14
        %s962 = scalar_lea.vmem [#allocation2], %s961
        %v963 = vld [vmem:[%s962] sm:$0xff]
        %v964 = vmul.f32 %v394, %v963
        %v965 = vadd.f32 %v960, %v964
        %966 = vst [vmem:[%s187] sm:$0xff] %v965
        %v967 = vld [vmem:[%s568] sm:$0xff]
        %v968 = vmul.f32 %v222, %v967
        %s969 = sadd.s32 8, 1
        %s970 = scalar_lea.vmem [#allocation2], %s969
        %v971 = vld [vmem:[%s970] sm:$0xff]
        %v972 = vmul.f32 %v225, %v971
        %v973 = vadd.f32 %v968, %v972
        %s974 = sadd.s32 8, 2
        %s975 = scalar_lea.vmem [#allocation2], %s974
        %v976 = vld [vmem:[%s975] sm:$0xff]
        %v977 = vmul.f32 %v238, %v976
        %v978 = vadd.f32 %v973, %v977
        %s979 = sadd.s32 8, 3
        %s980 = scalar_lea.vmem [#allocation2], %s979
        %v981 = vld [vmem:[%s980] sm:$0xff]
        %v982 = vmul.f32 %v251, %v981
        %v983 = vadd.f32 %v978, %v982
        %s984 = sadd.s32 8, 4
        %s985 = scalar_lea.vmem [#allocation2], %s984
        %v986 = vld [vmem:[%s985] sm:$0xff]
        %v987 = vmul.f32 %v264, %v986
        %v988 = vadd.f32 %v983, %v987
        %s989 = sadd.s32 8, 5
        %s990 = scalar_lea.vmem [#allocation2], %s989
        %v991 = vld [vmem:[%s990] sm:$0xff]
        %v992 = vmul.f32 %v277, %v991
        %v993 = vadd.f32 %v988, %v992
        %s994 = sadd.s32 8, 6
        %s995 = scalar_lea.vmem [#allocation2], %s994
        %v996 = vld [vmem:[%s995] sm:$0xff]
        %v997 = vmul.f32 %v290, %v996
        %v998 = vadd.f32 %v993, %v997
        %s999 = sadd.s32 8, 7
        %s1000 = scalar_lea.vmem [#allocation2], %s999
        %v1001 = vld [vmem:[%s1000] sm:$0xff]
        %v1002 = vmul.f32 %v303, %v1001
        %v1003 = vadd.f32 %v998, %v1002
        %s1004 = sadd.s32 8, 8
        %s1005 = scalar_lea.vmem [#allocation2], %s1004
        %v1006 = vld [vmem:[%s1005] sm:$0xff]
        %v1007 = vmul.f32 %v316, %v1006
        %v1008 = vadd.f32 %v1003, %v1007
        %s1009 = sadd.s32 8, 9
        %s1010 = scalar_lea.vmem [#allocation2], %s1009
        %v1011 = vld [vmem:[%s1010] sm:$0xff]
        %v1012 = vmul.f32 %v329, %v1011
        %v1013 = vadd.f32 %v1008, %v1012
        %s1014 = sadd.s32 8, 10
        %s1015 = scalar_lea.vmem [#allocation2], %s1014
        %v1016 = vld [vmem:[%s1015] sm:$0xff]
        %v1017 = vmul.f32 %v342, %v1016
        %v1018 = vadd.f32 %v1013, %v1017
        %s1019 = sadd.s32 8, 11
        %s1020 = scalar_lea.vmem [#allocation2], %s1019
        %v1021 = vld [vmem:[%s1020] sm:$0xff]
        %v1022 = vmul.f32 %v355, %v1021
        %v1023 = vadd.f32 %v1018, %v1022
        %s1024 = sadd.s32 8, 12
        %s1025 = scalar_lea.vmem [#allocation2], %s1024
        %v1026 = vld [vmem:[%s1025] sm:$0xff]
        %v1027 = vmul.f32 %v368, %v1026
        %v1028 = vadd.f32 %v1023, %v1027
        %s1029 = sadd.s32 8, 13
        %s1030 = scalar_lea.vmem [#allocation2], %s1029
        %v1031 = vld [vmem:[%s1030] sm:$0xff]
        %v1032 = vmul.f32 %v381, %v1031
        %v1033 = vadd.f32 %v1028, %v1032
        %s1034 = sadd.s32 8, 14
        %s1035 = scalar_lea.vmem [#allocation2], %s1034
        %v1036 = vld [vmem:[%s1035] sm:$0xff]
        %v1037 = vmul.f32 %v394, %v1036
        %v1038 = vadd.f32 %v1033, %v1037
        %s1039 = scalar_lea.vmem %s187, 8 [#allocation8]
        %1040 = vst [vmem:[%s1039] sm:$0xff] %v1038
        %s1041 = sand.u32 %s89, 1
        %s1042 = scalar_lea.sflag [#allocation5], %s1041
        %s1043 = sand.u32 %s89, 1
        %s1044 = smul.addr %s1043, 16
        %s1045 = scalar_lea.vmem [#allocation8], %s1044
        // Predicated region
        $region37: #{tpu_custom_call.1} parent=27 // pred_check
          %p1046 = pneg %p99
        $region38: #{tpu_custom_call.1} parent=27 // pred_check_branch
          %1048 = sbr.rel (%p1046) target = $region40
        $region39: #{tpu_custom_call.1} parent=27 // pred_region
          %s1050 = ssub.s32 256, 256
          %1051 = vsyncadd %s1042, %s1050
          %s1052 = smul.addr %s25, 2
          %s1053 = smul.addr %s24, 4
          %s1054 = sadd.s32 %s1052, %s1053
          %s1055 = smul.addr %s1054, 128
          %s1056 = scalar_lea.hbm %s2, %s1055
          %s1057 = sshll.u32 %s1045, 4
          %s1058 = int_to_ptr.vmem [resolvable:$true] %s1057
          %1063 = dma.vmem_to_hbm [thread:$0]  %s1058, 256, %s1056, %s1042, 128, 128, 8
        $region40: #{tpu_custom_call.1} parent=27 // pred_fallthru
          _
      $region28: #{tpu_custom_call.1} parent=5 // pred_fallthru
        _
      %p1064 = scmp.le.s32.totalorder 2, %s15
      // Predicated region
      $region41: #{tpu_custom_call.1} parent=5 // pred_check
        %p1065 = pneg %p1064
      $region42: #{tpu_custom_call.1} parent=5 // pred_check_branch
        %1067 = sbr.rel (%p1065) target = $region44
      $region43: #{tpu_custom_call.1} parent=5 // pred_region
        %s1068 = ssub.s32 %s15, 2
        // Predicated region
        $region45: #{tpu_custom_call.1} parent=43 // pred_check
          %p1069 = pneg %p105
        $region46: #{tpu_custom_call.1} parent=43 // pred_check_branch
          %1071 = sbr.rel (%p1069) target = $region48
        $region47: #{tpu_custom_call.1} parent=43 // pred_region
          %s1072 = sand.u32 %s90, 1
          %s1073 = scalar_lea.sflag [#allocation5], %s1072
          %s1074 = sand.u32 %s90, 1
          %s1075 = smul.addr %s1074, 16
          %s1076 = scalar_lea.vmem [#allocation8], %s1075
          %1077 = dma.done %s1073, 256
        $region48: #{tpu_custom_call.1} parent=43 // pred_fallthru
          _
      $region44: #{tpu_custom_call.1} parent=5 // pred_fallthru
        _
    $region6: #{tpu_custom_call.1} parent=1 // loop_footer
      %s19 = sadd.s32 1, %s15
    $region7: #{tpu_custom_call.1} parent=1 // loop_footer_branch
      %14 = sbr.rel target = $region3
    $region8: #{tpu_custom_call.1} parent=1 // loop_exit
      _
    %1078 = vsyncpa [#allocation4], 1
    %s1079 = scalar_lea.sflag [#allocation4], 1
    %1080 = vsyncpa %s1079, 1
    %1081 = vsyncpa [#allocation5], 1
    %s1082 = scalar_lea.sflag [#allocation5], 1
    %1083 = vsyncpa %s1082, 1
    %1084 = vsyncpa [#allocation6], 1
    %s1085 = scalar_lea.sflag [#allocation6], 1
    %1086 = vsyncpa %s1085, 1

</llo_original>
